<compile_context>
chip_gen: v5e
topology: v5e:2x2
jax: 0.10.0
libtpu: 0.0.40
codegen_flags: <defaults>
</compile_context>

<pallas_src>
import functools

import jax
import jax.numpy as jnp
from jax.experimental import pallas as pl
from jax.experimental.pallas import tpu as pltpu

# ----- hyper-parameters (from weak_gpt.py; `blocks` overridden to 3 Blocks with
# n_head=4) ----------------------------------------------------------------------
N_EMBD = 384
BLOCK_SIZE = 256
N_HEAD = 4
HEAD_SIZE = N_EMBD // N_HEAD          # 96
DPAD = 128                            # head_size zero-padded to one lane tile
N_BLOCKS = 3
VOCAB_SIZE = 65                       # chars = sorted(set(text)); synthetic choice
VOCAB_PAD = 128                       # lane-dense LM-head output
LN_EPS = 1e-5

TILE_M = 512                          # rows per grid step for row-wise kernels
VMEM_LIMIT = 48 * 1024 * 1024         # safe on v5e/v6e/v7x, >> actual need (~14 MiB)


# --------------------------- fused LayerNorm + matmul -----------------------------
def _ln_matmul_kernel(x_ref, g_ref, b_ref, w_ref, *rest, relu, has_bias):
    if has_bias:
        bias_ref, o_ref = rest
    else:
        (o_ref,) = rest
    x = x_ref[...]
    mu = jnp.mean(x, axis=-1, keepdims=True)
    xc = x - mu
    var = jnp.mean(xc * xc, axis=-1, keepdims=True)
    xn = xc * jax.lax.rsqrt(var + LN_EPS) * g_ref[...] + b_ref[...]
    y = jnp.dot(xn, w_ref[...], preferred_element_type=jnp.float32)
    if has_bias:
        y = y + bias_ref[...]
    if relu:
        y = jnp.maximum(y, 0.0)
    o_ref[...] = y


def ln_linear(x, gamma, beta, w, bias=None, relu=False, tile_m=TILE_M):
    """LayerNorm(x) @ w (+ bias) (+ ReLU), tiled over rows of x: (M, K)."""
    M, K = x.shape
    N = w.shape[1]
    tm = min(tile_m, M)
    in_specs = [pl.BlockSpec((tm, K), lambda i: (i, 0)),
                pl.BlockSpec((1, K), lambda i: (0, 0)),
                pl.BlockSpec((1, K), lambda i: (0, 0)),
                pl.BlockSpec((K, N), lambda i: (0, 0))]
    args = [x, gamma.reshape(1, K), beta.reshape(1, K), w]
    if bias is not None:
        in_specs.append(pl.BlockSpec((1, N), lambda i: (0, 0)))
        args.append(bias.reshape(1, N))
    return pl.pallas_call(
        functools.partial(_ln_matmul_kernel, relu=relu, has_bias=bias is not None),
        out_shape=jax.ShapeDtypeStruct((M, N), jnp.float32),
        grid=(pl.cdiv(M, tm),),
        in_specs=in_specs,
        out_specs=pl.BlockSpec((tm, N), lambda i: (i, 0)),
        compiler_params=pltpu.CompilerParams(
            dimension_semantics=("parallel",),
            vmem_limit_bytes=VMEM_LIMIT),
    )(*args)


# --------------------------- matmul + bias + residual -----------------------------
def _matmul_res_kernel(x_ref, w_ref, bias_ref, res_ref, o_ref):
    y = jnp.dot(x_ref[...], w_ref[...], preferred_element_type=jnp.float32)
    o_ref[...] = y + bias_ref[...] + res_ref[...]


def linear_residual(x, w, bias, res, tile_m=TILE_M):
    """res + (x @ w + bias), tiled over rows.  x: (M, K), res: (M, N)."""
    M, K = x.shape
    N = w.shape[1]
    tm = min(tile_m, M)
    return pl.pallas_call(
        _matmul_res_kernel,
        out_shape=jax.ShapeDtypeStruct((M, N), jnp.float32),
        grid=(pl.cdiv(M, tm),),
        in_specs=[pl.BlockSpec((tm, K), lambda i: (i, 0)),
                  pl.BlockSpec((K, N), lambda i: (0, 0)),
                  pl.BlockSpec((1, N), lambda i: (0, 0)),
                  pl.BlockSpec((tm, N), lambda i: (i, 0))],
        out_specs=pl.BlockSpec((tm, N), lambda i: (i, 0)),
        compiler_params=pltpu.CompilerParams(
            dimension_semantics=("parallel",),
            vmem_limit_bytes=VMEM_LIMIT),
    )(x, w, bias.reshape(1, N), res)


# --------------------------- causal attention --------------------------------------
def _attn_kernel(q_ref, k_ref, v_ref, o_ref, *, scale):
    q = q_ref[...]                                    # (T, DPAD)
    k = k_ref[...]                                    # (T, DPAD)
    v = v_ref[...]                                    # (T, DPAD)
    # q @ k^T without an explicit transpose (contract last dims).
    s = jax.lax.dot_general(q, k, (((1,), (1,)), ((), ())),
                            preferred_element_type=jnp.float32) * scale
    T = s.shape[0]
    row = jax.lax.broadcasted_iota(jnp.int32, (T, T), 0)
    col = jax.lax.broadcasted_iota(jnp.int32, (T, T), 1)
    s = jnp.where(col <= row, s, -jnp.inf)            # causal (tril) mask
    m = jnp.max(s, axis=-1, keepdims=True)
    e = jnp.exp(s - m)
    denom = jnp.sum(e, axis=-1, keepdims=True)
    p = e * pl.reciprocal(denom, approx=True)
    o_ref[...] = jnp.dot(p, v, preferred_element_type=jnp.float32)


def attention(qkv, scale):
    """qkv: (B, T, 3*H*DPAD), layout [q | k | v], each = H heads of DPAD lanes.
    Returns (B, T, H*DPAD) concatenated-head output (padded lanes are zero)."""
    B, T, _ = qkv.shape
    spec_q = pl.BlockSpec((None, T, DPAD), lambda b, h: (b, 0, h))
    spec_k = pl.BlockSpec((None, T, DPAD), lambda b, h: (b, 0, N_HEAD + h))
    spec_v = pl.BlockSpec((None, T, DPAD), lambda b, h: (b, 0, 2 * N_HEAD + h))
    out_spec = pl.BlockSpec((None, T, DPAD), lambda b, h: (b, 0, h))
    return pl.pallas_call(
        functools.partial(_attn_kernel, scale=scale),
        out_shape=jax.ShapeDtypeStruct((B, T, N_HEAD * DPAD), jnp.float32),
        grid=(B, N_HEAD),
        in_specs=[spec_q, spec_k, spec_v],
        out_specs=out_spec,
        compiler_params=pltpu.CompilerParams(
            dimension_semantics=("parallel", "parallel")),
    )(qkv, qkv, qkv)


# --------------------------- parameters ---------------------------------------------
def init_params(key):
    def nrm(k, shape, scale=0.02):
        return (scale * jax.random.normal(k, shape)).astype(jnp.float32)

    def pad_head_cols(w):          # (C, H*D) -> (C, H*DPAD), zero pad per head
        w = w.reshape(N_EMBD, N_HEAD, HEAD_SIZE)
        w = jnp.pad(w, ((0, 0), (0, 0), (0, DPAD - HEAD_SIZE)))
        return w.reshape(N_EMBD, N_HEAD * DPAD)

    def pad_head_rows(w):          # (H*D, C) -> (H*DPAD, C), zero pad per head
        w = w.reshape(N_HEAD, HEAD_SIZE, N_EMBD)
        w = jnp.pad(w, ((0, 0), (0, DPAD - HEAD_SIZE), (0, 0)))
        return w.reshape(N_HEAD * DPAD, N_EMBD)

    keys = iter(jax.random.split(key, 64))
    params = {
        "tok_emb": nrm(next(keys), (VOCAB_SIZE, N_EMBD)),
        "pos_emb": nrm(next(keys), (BLOCK_SIZE, N_EMBD)),
        "blocks": [],
        "lnf_g": jnp.ones((N_EMBD,), jnp.float32),
        "lnf_b": jnp.zeros((N_EMBD,), jnp.float32),
    }
    w_head = nrm(next(keys), (N_EMBD, VOCAB_SIZE))
    params["w_head_pad"] = jnp.pad(w_head, ((0, 0), (0, VOCAB_PAD - VOCAB_SIZE)))
    params["b_head_pad"] = jnp.zeros((VOCAB_PAD,), jnp.float32)

    for _ in range(N_BLOCKS):
        # per-head key/query/value weights (bias-free), fused + lane-padded
        wq = nrm(next(keys), (N_EMBD, N_HEAD * HEAD_SIZE))
        wk = nrm(next(keys), (N_EMBD, N_HEAD * HEAD_SIZE))
        wv = nrm(next(keys), (N_EMBD, N_HEAD * HEAD_SIZE))
        wo = nrm(next(keys), (N_EMBD, N_EMBD))
        blk = {
            "ln1_g": jnp.ones((N_EMBD,), jnp.float32),
            "ln1_b": jnp.zeros((N_EMBD,), jnp.float32),
            "wqkv": jnp.concatenate(
                [pad_head_cols(wq), pad_head_cols(wk), pad_head_cols(wv)], axis=1),
            "wo": pad_head_rows(wo),          # rows for padded head lanes are zero
            "bo": jnp.zeros((N_EMBD,), jnp.float32),
            "ln2_g": jnp.ones((N_EMBD,), jnp.float32),
            "ln2_b": jnp.zeros((N_EMBD,), jnp.float32),
            "w1": nrm(next(keys), (N_EMBD, 4 * N_EMBD)),
            "b1": jnp.zeros((4 * N_EMBD,), jnp.float32),
            "w2": nrm(next(keys), (4 * N_EMBD, N_EMBD)),
            "b2": jnp.zeros((N_EMBD,), jnp.float32),
        }
        params["blocks"].append(blk)
    return params


# --------------------------- forward pass ----------------------------------------------
def model_forward(params, idx, targets=None):
    B, T = idx.shape
    C = N_EMBD
    M = B * T
    # embedding gathers + broadcast add are glue (plain JAX)
    tok = params["tok_emb"][idx]                    # (B, T, C)
    pos = params["pos_emb"][:T]                     # (T, C)
    x = (tok + pos).reshape(M, C)                   # (M, C)

    scale = float(C) ** -0.5                        # reference uses C**-0.5, C = n_embd
    for blk in params["blocks"]:
        # --- self-attention sub-block: LN1 fused into QKV, residual fused into wo ---
        qkv = ln_linear(x, blk["ln1_g"], blk["ln1_b"], blk["wqkv"])   # (M, 3*H*DPAD)
        qkv = qkv.reshape(B, T, 3 * N_HEAD * DPAD)
        o = attention(qkv, scale)                                     # (B, T, H*DPAD)
        x = linear_residual(o.reshape(M, N_HEAD * DPAD), blk["wo"], blk["bo"], x)

        # --- feed-forward sub-block: LN2 fused into w1, residual fused into w2 ---
        h = ln_linear(x, blk["ln2_g"], blk["ln2_b"], blk["w1"], blk["b1"], relu=True)
        x = linear_residual(h, blk["w2"], blk["b2"], x)

    # final LayerNorm fused into the (lane-padded) LM head
    logits_pad = ln_linear(x, params["lnf_g"], params["lnf_b"],
                           params["w_head_pad"], params["b_head_pad"])
    logits = logits_pad[:, :VOCAB_SIZE].reshape(B, T, VOCAB_SIZE)

    loss = None
    if targets is not None:
        lg = logits.reshape(M, VOCAB_SIZE)
        lse = jax.nn.logsumexp(lg, axis=-1)
        picked = jnp.take_along_axis(lg, targets.reshape(M, 1), axis=-1)[:, 0]
        loss = jnp.mean(lse - picked)               # F.cross_entropy (mean)
    return logits, loss


# --------------------------- main -------------------------------------------------------
if __name__ == "__main__":
    key = jax.random.PRNGKey(0)
    pkey, ikey = jax.random.split(key)
    params = init_params(pkey)

    B, T = 2, 8                                     # T <= block_size
    idx = jax.random.randint(ikey, (B, T), 0, VOCAB_SIZE, dtype=jnp.int32)

    logits, loss = model_forward(params, idx, targets=None)
    jax.block_until_ready(logits)
    assert logits.shape == (B, T, VOCAB_SIZE)
    assert loss is None
    print("KERNEL_OK")
</pallas_src>

<mosaic_0001>
module attributes {stable_mosaic.version = 11 : i64} {
  func.func @_ln_matmul_kernel(%arg0: i32, %arg1: memref<16x384xf32, #tpu.memory_space<vmem>>, %arg2: memref<1x384xf32, #tpu.memory_space<vmem>>, %arg3: memref<1x384xf32, #tpu.memory_space<vmem>>, %arg4: memref<384x1536xf32, #tpu.memory_space<vmem>>, %arg5: memref<16x1536xf32, #tpu.memory_space<vmem>>) attributes {dimension_semantics = [#tpu.dimension_semantics<parallel>], iteration_bounds = array<i64: 1>, scalar_prefetch = 0 : i64, scratch_operands = 0 : i64, tpu.core_type = #tpu.core_type<tc>, window_params = [{transform_indices = @transform_0, window_bounds = array<i64: 16, 384>}, {pipeline_mode = #tpu.pipeline_mode<synchronous>, transform_indices = @transform_1, window_bounds = array<i64: 1, 384>}, {pipeline_mode = #tpu.pipeline_mode<synchronous>, transform_indices = @transform_2, window_bounds = array<i64: 1, 384>}, {pipeline_mode = #tpu.pipeline_mode<synchronous>, transform_indices = @transform_3, window_bounds = array<i64: 384, 1536>}, {transform_indices = @transform_4, window_bounds = array<i64: 16, 1536>}]} {
    %c0 = arith.constant 0 : index
    %c0_0 = arith.constant 0 : index
    %0 = vector.load %arg1[%c0, %c0_0] : memref<16x384xf32, #tpu.memory_space<vmem>>, vector<16x384xf32>
    %cst = arith.constant dense<0.000000e+00> : vector<16xf32>
    %1 = vector.multi_reduction <add>, %0, %cst [1] : vector<16x384xf32> to vector<16xf32>
    %2 = vector.shape_cast %1 : vector<16xf32> to vector<16x1xf32>
    %cst_1 = arith.constant 3.840000e+02 : f32
    %3 = vector.broadcast %cst_1 : f32 to vector<16x1xf32>
    %4 = arith.divf %2, %3 : vector<16x1xf32>
    %5 = vector.broadcast %4 : vector<16x1xf32> to vector<16x384xf32>
    %6 = arith.subf %0, %5 : vector<16x384xf32>
    %7 = arith.mulf %6, %6 : vector<16x384xf32>
    %cst_2 = arith.constant dense<0.000000e+00> : vector<16xf32>
    %8 = vector.multi_reduction <add>, %7, %cst_2 [1] : vector<16x384xf32> to vector<16xf32>
    %9 = vector.shape_cast %8 : vector<16xf32> to vector<16x1xf32>
    %cst_3 = arith.constant 3.840000e+02 : f32
    %10 = vector.broadcast %cst_3 : f32 to vector<16x1xf32>
    %11 = arith.divf %9, %10 : vector<16x1xf32>
    %cst_4 = arith.constant 9.99999974E-6 : f32
    %12 = vector.broadcast %cst_4 : f32 to vector<16x1xf32>
    %13 = arith.addf %11, %12 : vector<16x1xf32>
    %14 = math.rsqrt %13 : vector<16x1xf32>
    %15 = vector.broadcast %14 : vector<16x1xf32> to vector<16x384xf32>
    %16 = arith.mulf %6, %15 : vector<16x384xf32>
    %c0_5 = arith.constant 0 : index
    %c0_6 = arith.constant 0 : index
    %17 = vector.load %arg2[%c0_5, %c0_6] : memref<1x384xf32, #tpu.memory_space<vmem>>, vector<1x384xf32>
    %18 = vector.broadcast %17 : vector<1x384xf32> to vector<16x384xf32>
    %19 = arith.mulf %16, %18 : vector<16x384xf32>
    %c0_7 = arith.constant 0 : index
    %c0_8 = arith.constant 0 : index
    %20 = vector.load %arg3[%c0_7, %c0_8] : memref<1x384xf32, #tpu.memory_space<vmem>>, vector<1x384xf32>
    %21 = vector.broadcast %20 : vector<1x384xf32> to vector<16x384xf32>
    %22 = arith.addf %19, %21 : vector<16x384xf32>
    %c0_9 = arith.constant 0 : index
    %c0_10 = arith.constant 0 : index
    %23 = vector.load %arg4[%c0_9, %c0_10] : memref<384x1536xf32, #tpu.memory_space<vmem>>, vector<384x1536xf32>
    %cst_11 = arith.constant dense<0.000000e+00> : vector<16x1536xf32>
    %24 = tpu.matmul %22, %23, %cst_11 {dimension_numbers = #tpu.dot_dimension_numbers<[1], [0], [0], [1], [0, 0, 1, 1], [], []>} : vector<16x384xf32>, vector<384x1536xf32>, vector<16x1536xf32> -> vector<16x1536xf32>
    %c0_12 = arith.constant 0 : index
    %c0_13 = arith.constant 0 : index
    %25 = vector.load %arg5[%c0_12, %c0_13] : memref<16x1536xf32, #tpu.memory_space<vmem>>, vector<16x1536xf32>
    tpu.vector_store %arg5[%c0_12, %c0_13], %24 {strides = array<i32>} : memref<16x1536xf32, #tpu.memory_space<vmem>>, vector<16x1536xf32>,
    return
  }
  func.func @transform_0(%arg0: i32) -> (i32, i32) {
    %c0_i32 = arith.constant 0 : i32
    %c0_i32_0 = arith.constant 0 : i32
    return %arg0, %c0_i32 : i32, i32
  }
  func.func @transform_1(%arg0: i32) -> (i32, i32) {
    %c0_i32 = arith.constant 0 : i32
    %c0_i32_0 = arith.constant 0 : i32
    %c0_i32_1 = arith.constant 0 : i32
    return %c0_i32, %c0_i32_0 : i32, i32
  }
  func.func @transform_2(%arg0: i32) -> (i32, i32) {
    %c0_i32 = arith.constant 0 : i32
    %c0_i32_0 = arith.constant 0 : i32
    %c0_i32_1 = arith.constant 0 : i32
    return %c0_i32, %c0_i32_0 : i32, i32
  }
  func.func @transform_3(%arg0: i32) -> (i32, i32) {
    %c0_i32 = arith.constant 0 : i32
    %c0_i32_0 = arith.constant 0 : i32
    %c0_i32_1 = arith.constant 0 : i32
    return %c0_i32, %c0_i32_0 : i32, i32
  }
  func.func @transform_4(%arg0: i32) -> (i32, i32) {
    %c0_i32 = arith.constant 0 : i32
    %c0_i32_0 = arith.constant 0 : i32
    return %arg0, %c0_i32 : i32, i32
  }
}

</mosaic_0001>

<llo_original>
// kernel: tpu_custom_call.1
$region0: #{tpu_custom_call.1}
  #allocation0 [shape = 'u32[]', space=smem, size = 0x4, offset = 0x4, fixed_abs, tag = 'smem constant byte address 0x4 - core index']
  #allocation1 [shape = 'u32[72,128]{1,0:T(1,128)}', space=vmem, size = 0x9000, scoped, tag = 'internal scratch']
  %s0 = inlined_call_operand.hbm [shape: f32[16,384], index: 0, kind: input, shape index: {}]
  %s1 = inlined_call_operand.hbm [shape: f32[1,384], index: 1, kind: input, shape index: {}]
  %s2 = inlined_call_operand.hbm [shape: f32[1,384], index: 2, kind: input, shape index: {}]
  %s3 = inlined_call_operand.hbm [shape: f32[384,1536], index: 3, kind: input, shape index: {}]
  %s4 = inlined_call_operand.hbm [shape: f32[16,1536], index: 4, kind: output, shape index: {}]
  %s5 = sld [smem:[#allocation0]]
  $region42: #{tpu_custom_call.1} parent=0
    _
  %s7 = ssub.s32 1, %s5
  %s8 = scalar_select 0, %s7, %s5
  $region1: #{tpu_custom_call.1} parent=0
    #allocation2 [shape = 'u8[24576]{0}', space=vmem, size = 0x6000, scoped, tag = 'input window, operand 0, single buffered']
    #allocation3 [shape = 's32[1]{0}', space=sflag, size = 0x4, scoped, tag = 'scoped memory for tpu_custom_call.1']
    #allocation4 [shape = 's32[1]{0}', space=sflag, size = 0x4, scoped, tag = 'scoped memory for tpu_custom_call.1']
    #allocation5 [shape = 'u8[1536]{0}', space=vmem, size = 0x800, scoped, tag = 'input window, operand 1, single buffered']
    #allocation6 [shape = 's32[1]{0}', space=sflag, size = 0x4, scoped, tag = 'scoped memory for tpu_custom_call.1']
    #allocation7 [shape = 'u8[1536]{0}', space=vmem, size = 0x800, scoped, tag = 'input window, operand 2, single buffered']
    #allocation8 [shape = 'u8[2359296]{0}', space=vmem, size = 0x240000, scoped, tag = 'input window, operand 3, single buffered']
    #allocation9 [shape = 's32[1]{0}', space=sflag, size = 0x4, scoped, tag = 'scoped memory for tpu_custom_call.1']
    #allocation10 [shape = 'u8[98304]{0}', space=vmem, size = 0x18000, scoped, tag = 'output window, operand 0, single buffered']
    %9 = vsyncpa [#allocation3], 0
    %10 = vsyncpa [#allocation6], 0
    %11 = vsyncpa [#allocation9], 0
    %12 = vsyncpa [#allocation4], 0
    // Predicated region
    $region2: #{tpu_custom_call.1} parent=1 // pred_check
      _
    $region3: #{tpu_custom_call.1} parent=1 // pred_check_branch
      %14 = sbr.rel (0) target = $region5
    $region4: #{tpu_custom_call.1} parent=1 // pred_region
      %16 = vsyncadd [#allocation3], 0
      %s17 = sshll.u32 %s0, 4
      %s18 = int_to_ptr.hbm [resolvable:$true] %s17
      %s19 = sshll.u32 [#allocation2], 4
      %s20 = int_to_ptr.vmem [resolvable:$true] %s19
      %25 = dma.hbm_to_vmem [thread:$0]  %s18, 768, %s20, [#allocation3], 384, 384, 24
    $region5: #{tpu_custom_call.1} parent=1 // pred_fallthru
      _
    // Predicated region
    $region6: #{tpu_custom_call.1} parent=1 // pred_check
      _
    $region7: #{tpu_custom_call.1} parent=1 // pred_check_branch
      %27 = sbr.rel (0) target = $region9
    $region8: #{tpu_custom_call.1} parent=1 // pred_region
      %29 = vsyncadd [#allocation6], 0
      %s31 = sshll.u32 %s1, 4
      %s32 = int_to_ptr.hbm [resolvable:$true] %s31
      %s33 = sshll.u32 [#allocation5], 4
      %s34 = int_to_ptr.vmem [resolvable:$true] %s33
      %36 = dma.hbm_to_vmem [thread:$0]  %s32, 48, %s34, [#allocation6]
    $region9: #{tpu_custom_call.1} parent=1 // pred_fallthru
      _
    // Predicated region
    $region10: #{tpu_custom_call.1} parent=1 // pred_check
      _
    $region11: #{tpu_custom_call.1} parent=1 // pred_check_branch
      %38 = sbr.rel (0) target = $region13
    $region12: #{tpu_custom_call.1} parent=1 // pred_region
      %40 = vsyncadd [#allocation6], 0
      %s42 = sshll.u32 %s2, 4
      %s43 = int_to_ptr.hbm [resolvable:$true] %s42
      %s44 = sshll.u32 [#allocation7], 4
      %s45 = int_to_ptr.vmem [resolvable:$true] %s44
      %47 = dma.hbm_to_vmem [thread:$0]  %s43, 48, %s45, [#allocation6]
    $region13: #{tpu_custom_call.1} parent=1 // pred_fallthru
      _
    // Predicated region
    $region14: #{tpu_custom_call.1} parent=1 // pred_check
      _
    $region15: #{tpu_custom_call.1} parent=1 // pred_check_branch
      %49 = sbr.rel (0) target = $region17
    $region16: #{tpu_custom_call.1} parent=1 // pred_region
      %51 = vsyncadd [#allocation9], 0
      %s52 = sshll.u32 %s3, 4
      %s53 = int_to_ptr.hbm [resolvable:$true] %s52
      %s54 = sshll.u32 [#allocation8], 4
      %s55 = int_to_ptr.vmem [resolvable:$true] %s54
      %60 = dma.hbm_to_vmem [thread:$0]  %s53, 73728, %s55, [#allocation9], 1536, 1536, 96
    $region17: #{tpu_custom_call.1} parent=1 // pred_fallthru
      _
    // Predicated region
    $region18: #{tpu_custom_call.1} parent=1 // pred_check
      _
    $region19: #{tpu_custom_call.1} parent=1 // pred_check_branch
      %62 = sbr.rel (0) target = $region21
    $region20: #{tpu_custom_call.1} parent=1 // pred_region
      %64 = dma.done [#allocation3], 768
    $region21: #{tpu_custom_call.1} parent=1 // pred_fallthru
      _
    // Predicated region
    $region22: #{tpu_custom_call.1} parent=1 // pred_check
      _
    $region23: #{tpu_custom_call.1} parent=1 // pred_check_branch
      %66 = sbr.rel (0) target = $region25
    $region24: #{tpu_custom_call.1} parent=1 // pred_region
      %68 = dma.done [#allocation6], 48
    $region25: #{tpu_custom_call.1} parent=1 // pred_fallthru
      _
    // Predicated region
    $region26: #{tpu_custom_call.1} parent=1 // pred_check
      _
    $region27: #{tpu_custom_call.1} parent=1 // pred_check_branch
      %70 = sbr.rel (0) target = $region29
    $region28: #{tpu_custom_call.1} parent=1 // pred_region
      %72 = dma.done [#allocation6], 48
    $region29: #{tpu_custom_call.1} parent=1 // pred_fallthru
      _
    // Predicated region
    $region30: #{tpu_custom_call.1} parent=1 // pred_check
      _
    $region31: #{tpu_custom_call.1} parent=1 // pred_check_branch
      %74 = sbr.rel (0) target = $region33
    $region32: #{tpu_custom_call.1} parent=1 // pred_region
      %76 = dma.done [#allocation9], 73728
    $region33: #{tpu_custom_call.1} parent=1 // pred_fallthru
      _
    %v77 = vld [vmem:[#allocation2] sm:$0xff]
    %v78 = vld [vmem:[#allocation2 + $0x8] sm:$0xff]
    %v79 = vld [vmem:[#allocation2 + $0x10] sm:$0xff]
    %v80 = vld [vmem:[#allocation2 + $0x18] sm:$0xff]
    %v81 = vld [vmem:[#allocation2 + $0x20] sm:$0xff]
    %v82 = vld [vmem:[#allocation2 + $0x28] sm:$0xff]
    %v83 = vadd.f32 %v77, %v78
    %v84 = vadd.f32 %v83, %v79
    %85 = vadd.xlane.f32.xlu0 %v84
    %v86 = vpop.xlane.xlu0 %85
    %v87 = vadd.f32 %v80, %v81
    %v88 = vadd.f32 %v87, %v82
    %89 = vadd.xlane.f32.xlu0 %v88
    %v90 = vpop.xlane.xlu0 %89
    %v91 = vrcp.pop 384.0
    %v92 = vmul.f32 384.0, %v91
    %v93 = vsub.f32 1.0, %v92
    %v94 = vmul.f32 %v91, %v93
    %v95 = vadd.f32 %v91, %v94
    %vm96 = vweird.f32 %v91
    %v97 = vsel %vm96, %v91, %v95
    %v98 = vmul.f32 %v86, %v97
    %v99 = vmul.f32 %v90, %v97
    %v100 = vsub.f32 %v77, %v98
    %v101 = vsub.f32 %v78, %v98
    %v102 = vsub.f32 %v79, %v98
    %v103 = vsub.f32 %v80, %v99
    %v104 = vsub.f32 %v81, %v99
    %v105 = vsub.f32 %v82, %v99
    %v106 = vmul.f32 %v100, %v100
    %v107 = vmul.f32 %v101, %v101
    %v108 = vmul.f32 %v102, %v102
    %v109 = vmul.f32 %v103, %v103
    %v110 = vmul.f32 %v104, %v104
    %v111 = vmul.f32 %v105, %v105
    %v112 = vadd.f32 %v106, %v107
    %v113 = vadd.f32 %v112, %v108
    %114 = vadd.xlane.f32.xlu0 %v113
    %v115 = vpop.xlane.xlu0 %114
    %v116 = vadd.f32 %v109, %v110
    %v117 = vadd.f32 %v116, %v111
    %118 = vadd.xlane.f32.xlu0 %v117
    %v119 = vpop.xlane.xlu0 %118
    %v120 = vmul.f32 %v115, %v97
    %v121 = vmul.f32 %v119, %v97
    %v122 = vadd.f32 %v120, 1e-05
    %v123 = vadd.f32 %v121, 1e-05
    %v124 = vrsqrt.pop %v122
    %v125 = vmul.f32 %v124, %v122
    %v126 = vmul.f32 %v125, %v124
    %v127 = vmul.f32 0.5, %v126
    %v128 = vsub.f32 1.5, %v127
    %v129 = vmul.f32 %v124, %v128
    %vm130 = vweird.f32 %v122
    %vm131 = vweird.f32 %v124
    %vm132 = vmor %vm130, %vm131
    %v133 = vsel %vm132, %v124, %v129
    %v134 = vrsqrt.pop %v123
    %v135 = vmul.f32 %v134, %v123
    %v136 = vmul.f32 %v135, %v134
    %v137 = vmul.f32 0.5, %v136
    %v138 = vsub.f32 1.5, %v137
    %v139 = vmul.f32 %v134, %v138
    %vm140 = vweird.f32 %v123
    %vm141 = vweird.f32 %v134
    %vm142 = vmor %vm140, %vm141
    %v143 = vsel %vm142, %v134, %v139
    %v144 = vmul.f32 %v100, %v133
    %v145 = vmul.f32 %v101, %v133
    %v146 = vmul.f32 %v102, %v133
    %v147 = vmul.f32 %v103, %v143
    %v148 = vmul.f32 %v104, %v143
    %v149 = vmul.f32 %v105, %v143
    %v150 = vld [vmem:[#allocation5] sm:$0x7]
    %v152 = vperm.slane %v150, 0
    %v153 = vperm.slane %v150, 1
    %v154 = vperm.slane %v150, 2
    %v158 = vmul.f32 %v144, %v152
    %v159 = vmul.f32 %v145, %v153
    %v160 = vmul.f32 %v146, %v154
    %v161 = vmul.f32 %v147, %v152
    %v162 = vmul.f32 %v148, %v153
    %v163 = vmul.f32 %v149, %v154
    %v164 = vld [vmem:[#allocation7] sm:$0x7]
    %v166 = vperm.slane %v164, 0
    %v167 = vperm.slane %v164, 1
    %v168 = vperm.slane %v164, 2
    %v172 = vadd.f32 %v158, %v166
    %v173 = vadd.f32 %v159, %v167
    %v174 = vadd.f32 %v160, %v168
    %v175 = vadd.f32 %v161, %v166
    %v176 = vadd.f32 %v162, %v167
    %v177 = vadd.f32 %v163, %v168
    %v178 = vld [vmem:[#allocation8] sm:$0xff]
    %v179 = vld [vmem:[#allocation8 + $0x8] sm:$0xff]
    %v180 = vld [vmem:[#allocation8 + $0x10] sm:$0xff]
    %v181 = vld [vmem:[#allocation8 + $0x18] sm:$0xff]
    %v182 = vld [vmem:[#allocation8 + $0x20] sm:$0xff]
    %v183 = vld [vmem:[#allocation8 + $0x28] sm:$0xff]
    %v184 = vld [vmem:[#allocation8 + $0x30] sm:$0xff]
    %v185 = vld [vmem:[#allocation8 + $0x38] sm:$0xff]
    %v186 = vld [vmem:[#allocation8 + $0x40] sm:$0xff]
    %v187 = vld [vmem:[#allocation8 + $0x48] sm:$0xff]
    %v188 = vld [vmem:[#allocation8 + $0x50] sm:$0xff]
    %v189 = vld [vmem:[#allocation8 + $0x58] sm:$0xff]
    %v190 = vld [vmem:[#allocation8 + $0x60] sm:$0xff]
    %v191 = vld [vmem:[#allocation8 + $0x68] sm:$0xff]
    %v192 = vld [vmem:[#allocation8 + $0x70] sm:$0xff]
    %v193 = vld [vmem:[#allocation8 + $0x78] sm:$0xff]
    %v194 = vld [vmem:[#allocation8 + $0x80] sm:$0xff]
    %v195 = vld [vmem:[#allocation8 + $0x88] sm:$0xff]
    %v196 = vld [vmem:[#allocation8 + $0x90] sm:$0xff]
    %v197 = vld [vmem:[#allocation8 + $0x98] sm:$0xff]
    %v198 = vld [vmem:[#allocation8 + $0xa0] sm:$0xff]
    %v199 = vld [vmem:[#allocation8 + $0xa8] sm:$0xff]
    %v200 = vld [vmem:[#allocation8 + $0xb0] sm:$0xff]
    %v201 = vld [vmem:[#allocation8 + $0xb8] sm:$0xff]
    %v202 = vld [vmem:[#allocation8 + $0xc0] sm:$0xff]
    %v203 = vld [vmem:[#allocation8 + $0xc8] sm:$0xff]
    %v204 = vld [vmem:[#allocation8 + $0xd0] sm:$0xff]
    %v205 = vld [vmem:[#allocation8 + $0xd8] sm:$0xff]
    %v206 = vld [vmem:[#allocation8 + $0xe0] sm:$0xff]
    %v207 = vld [vmem:[#allocation8 + $0xe8] sm:$0xff]
    %v208 = vld [vmem:[#allocation8 + $0xf0] sm:$0xff]
    %v209 = vld [vmem:[#allocation8 + $0xf8] sm:$0xff]
    %v210 = vld [vmem:[#allocation8 + $0x100] sm:$0xff]
    %v211 = vld [vmem:[#allocation8 + $0x108] sm:$0xff]
    %v212 = vld [vmem:[#allocation8 + $0x110] sm:$0xff]
    %v213 = vld [vmem:[#allocation8 + $0x118] sm:$0xff]
    %v214 = vld [vmem:[#allocation8 + $0x120] sm:$0xff]
    %v215 = vld [vmem:[#allocation8 + $0x128] sm:$0xff]
    %v216 = vld [vmem:[#allocation8 + $0x130] sm:$0xff]
    %v217 = vld [vmem:[#allocation8 + $0x138] sm:$0xff]
    %v218 = vld [vmem:[#allocation8 + $0x140] sm:$0xff]
    %v219 = vld [vmem:[#allocation8 + $0x148] sm:$0xff]
    %v220 = vld [vmem:[#allocation8 + $0x150] sm:$0xff]
    %v221 = vld [vmem:[#allocation8 + $0x158] sm:$0xff]
    %v222 = vld [vmem:[#allocation8 + $0x160] sm:$0xff]
    %v223 = vld [vmem:[#allocation8 + $0x168] sm:$0xff]
    %v224 = vld [vmem:[#allocation8 + $0x170] sm:$0xff]
    %v225 = vld [vmem:[#allocation8 + $0x178] sm:$0xff]
    %v226 = vld [vmem:[#allocation8 + $0x180] sm:$0xff]
    %v227 = vld [vmem:[#allocation8 + $0x188] sm:$0xff]
    %v228 = vld [vmem:[#allocation8 + $0x190] sm:$0xff]
    %v229 = vld [vmem:[#allocation8 + $0x198] sm:$0xff]
    %v230 = vld [vmem:[#allocation8 + $0x1a0] sm:$0xff]
    %v231 = vld [vmem:[#allocation8 + $0x1a8] sm:$0xff]
    %v232 = vld [vmem:[#allocation8 + $0x1b0] sm:$0xff]
    %v233 = vld [vmem:[#allocation8 + $0x1b8] sm:$0xff]
    %v234 = vld [vmem:[#allocation8 + $0x1c0] sm:$0xff]
    %v235 = vld [vmem:[#allocation8 + $0x1c8] sm:$0xff]
    %v236 = vld [vmem:[#allocation8 + $0x1d0] sm:$0xff]
    %v237 = vld [vmem:[#allocation8 + $0x1d8] sm:$0xff]
    %v238 = vld [vmem:[#allocation8 + $0x1e0] sm:$0xff]
    %v239 = vld [vmem:[#allocation8 + $0x1e8] sm:$0xff]
    %v240 = vld [vmem:[#allocation8 + $0x1f0] sm:$0xff]
    %v241 = vld [vmem:[#allocation8 + $0x1f8] sm:$0xff]
    %v242 = vld [vmem:[#allocation8 + $0x200] sm:$0xff]
    %v243 = vld [vmem:[#allocation8 + $0x208] sm:$0xff]
    %v244 = vld [vmem:[#allocation8 + $0x210] sm:$0xff]
    %v245 = vld [vmem:[#allocation8 + $0x218] sm:$0xff]
    %v246 = vld [vmem:[#allocation8 + $0x220] sm:$0xff]
    %v247 = vld [vmem:[#allocation8 + $0x228] sm:$0xff]
    %v248 = vld [vmem:[#allocation8 + $0x230] sm:$0xff]
    %v249 = vld [vmem:[#allocation8 + $0x238] sm:$0xff]
    %v250 = vld [vmem:[#allocation8 + $0x240] sm:$0xff]
    %v251 = vld [vmem:[#allocation8 + $0x248] sm:$0xff]
    %v252 = vld [vmem:[#allocation8 + $0x250] sm:$0xff]
    %v253 = vld [vmem:[#allocation8 + $0x258] sm:$0xff]
    %v254 = vld [vmem:[#allocation8 + $0x260] sm:$0xff]
    %v255 = vld [vmem:[#allocation8 + $0x268] sm:$0xff]
    %v256 = vld [vmem:[#allocation8 + $0x270] sm:$0xff]
    %v257 = vld [vmem:[#allocation8 + $0x278] sm:$0xff]
    %v258 = vld [vmem:[#allocation8 + $0x280] sm:$0xff]
    %v259 = vld [vmem:[#allocation8 + $0x288] sm:$0xff]
    %v260 = vld [vmem:[#allocation8 + $0x290] sm:$0xff]
    %v261 = vld [vmem:[#allocation8 + $0x298] sm:$0xff]
    %v262 = vld [vmem:[#allocation8 + $0x2a0] sm:$0xff]
    %v263 = vld [vmem:[#allocation8 + $0x2a8] sm:$0xff]
    %v264 = vld [vmem:[#allocation8 + $0x2b0] sm:$0xff]
    %v265 = vld [vmem:[#allocation8 + $0x2b8] sm:$0xff]
    %v266 = vld [vmem:[#allocation8 + $0x2c0] sm:$0xff]
    %v267 = vld [vmem:[#allocation8 + $0x2c8] sm:$0xff]
    %v268 = vld [vmem:[#allocation8 + $0x2d0] sm:$0xff]
    %v269 = vld [vmem:[#allocation8 + $0x2d8] sm:$0xff]
    %v270 = vld [vmem:[#allocation8 + $0x2e0] sm:$0xff]
    %v271 = vld [vmem:[#allocation8 + $0x2e8] sm:$0xff]
    %v272 = vld [vmem:[#allocation8 + $0x2f0] sm:$0xff]
    %v273 = vld [vmem:[#allocation8 + $0x2f8] sm:$0xff]
    %v274 = vld [vmem:[#allocation8 + $0x300] sm:$0xff]
    %v275 = vld [vmem:[#allocation8 + $0x308] sm:$0xff]
    %v276 = vld [vmem:[#allocation8 + $0x310] sm:$0xff]
    %v277 = vld [vmem:[#allocation8 + $0x318] sm:$0xff]
    %v278 = vld [vmem:[#allocation8 + $0x320] sm:$0xff]
    %v279 = vld [vmem:[#allocation8 + $0x328] sm:$0xff]
    %v280 = vld [vmem:[#allocation8 + $0x330] sm:$0xff]
    %v281 = vld [vmem:[#allocation8 + $0x338] sm:$0xff]
    %v282 = vld [vmem:[#allocation8 + $0x340] sm:$0xff]
    %v283 = vld [vmem:[#allocation8 + $0x348] sm:$0xff]
    %v284 = vld [vmem:[#allocation8 + $0x350] sm:$0xff]
    %v285 = vld [vmem:[#allocation8 + $0x358] sm:$0xff]
    %v286 = vld [vmem:[#allocation8 + $0x360] sm:$0xff]
    %v287 = vld [vmem:[#allocation8 + $0x368] sm:$0xff]
    %v288 = vld [vmem:[#allocation8 + $0x370] sm:$0xff]
    %v289 = vld [vmem:[#allocation8 + $0x378] sm:$0xff]
    %v290 = vld [vmem:[#allocation8 + $0x380] sm:$0xff]
    %v291 = vld [vmem:[#allocation8 + $0x388] sm:$0xff]
    %v292 = vld [vmem:[#allocation8 + $0x390] sm:$0xff]
    %v293 = vld [vmem:[#allocation8 + $0x398] sm:$0xff]
    %v294 = vld [vmem:[#allocation8 + $0x3a0] sm:$0xff]
    %v295 = vld [vmem:[#allocation8 + $0x3a8] sm:$0xff]
    %v296 = vld [vmem:[#allocation8 + $0x3b0] sm:$0xff]
    %v297 = vld [vmem:[#allocation8 + $0x3b8] sm:$0xff]
    %v298 = vld [vmem:[#allocation8 + $0x3c0] sm:$0xff]
    %v299 = vld [vmem:[#allocation8 + $0x3c8] sm:$0xff]
    %v300 = vld [vmem:[#allocation8 + $0x3d0] sm:$0xff]
    %v301 = vld [vmem:[#allocation8 + $0x3d8] sm:$0xff]
    %v302 = vld [vmem:[#allocation8 + $0x3e0] sm:$0xff]
    %v303 = vld [vmem:[#allocation8 + $0x3e8] sm:$0xff]
    %v304 = vld [vmem:[#allocation8 + $0x3f0] sm:$0xff]
    %v305 = vld [vmem:[#allocation8 + $0x3f8] sm:$0xff]
    %v306 = vld [vmem:[#allocation8 + $0x400] sm:$0xff]
    %v307 = vld [vmem:[#allocation8 + $0x408] sm:$0xff]
    %v308 = vld [vmem:[#allocation8 + $0x410] sm:$0xff]
    %v309 = vld [vmem:[#allocation8 + $0x418] sm:$0xff]
    %v310 = vld [vmem:[#allocation8 + $0x420] sm:$0xff]
    %v311 = vld [vmem:[#allocation8 + $0x428] sm:$0xff]
    %v312 = vld [vmem:[#allocation8 + $0x430] sm:$0xff]
    %v313 = vld [vmem:[#allocation8 + $0x438] sm:$0xff]
    %v314 = vld [vmem:[#allocation8 + $0x440] sm:$0xff]
    %v315 = vld [vmem:[#allocation8 + $0x448] sm:$0xff]
    %v316 = vld [vmem:[#allocation8 + $0x450] sm:$0xff]
    %v317 = vld [vmem:[#allocation8 + $0x458] sm:$0xff]
    %v318 = vld [vmem:[#allocation8 + $0x460] sm:$0xff]
    %v319 = vld [vmem:[#allocation8 + $0x468] sm:$0xff]
    %v320 = vld [vmem:[#allocation8 + $0x470] sm:$0xff]
    %v321 = vld [vmem:[#allocation8 + $0x478] sm:$0xff]
    %v322 = vld [vmem:[#allocation8 + $0x480] sm:$0xff]
    %v323 = vld [vmem:[#allocation8 + $0x488] sm:$0xff]
    %v324 = vld [vmem:[#allocation8 + $0x490] sm:$0xff]
    %v325 = vld [vmem:[#allocation8 + $0x498] sm:$0xff]
    %v326 = vld [vmem:[#allocation8 + $0x4a0] sm:$0xff]
    %v327 = vld [vmem:[#allocation8 + $0x4a8] sm:$0xff]
    %v328 = vld [vmem:[#allocation8 + $0x4b0] sm:$0xff]
    %v329 = vld [vmem:[#allocation8 + $0x4b8] sm:$0xff]
    %v330 = vld [vmem:[#allocation8 + $0x4c0] sm:$0xff]
    %v331 = vld [vmem:[#allocation8 + $0x4c8] sm:$0xff]
    %v332 = vld [vmem:[#allocation8 + $0x4d0] sm:$0xff]
    %v333 = vld [vmem:[#allocation8 + $0x4d8] sm:$0xff]
    %v334 = vld [vmem:[#allocation8 + $0x4e0] sm:$0xff]
    %v335 = vld [vmem:[#allocation8 + $0x4e8] sm:$0xff]
    %v336 = vld [vmem:[#allocation8 + $0x4f0] sm:$0xff]
    %v337 = vld [vmem:[#allocation8 + $0x4f8] sm:$0xff]
    %v338 = vld [vmem:[#allocation8 + $0x500] sm:$0xff]
    %v339 = vld [vmem:[#allocation8 + $0x508] sm:$0xff]
    %v340 = vld [vmem:[#allocation8 + $0x510] sm:$0xff]
    %v341 = vld [vmem:[#allocation8 + $0x518] sm:$0xff]
    %v342 = vld [vmem:[#allocation8 + $0x520] sm:$0xff]
    %v343 = vld [vmem:[#allocation8 + $0x528] sm:$0xff]
    %v344 = vld [vmem:[#allocation8 + $0x530] sm:$0xff]
    %v345 = vld [vmem:[#allocation8 + $0x538] sm:$0xff]
    %v346 = vld [vmem:[#allocation8 + $0x540] sm:$0xff]
    %v347 = vld [vmem:[#allocation8 + $0x548] sm:$0xff]
    %v348 = vld [vmem:[#allocation8 + $0x550] sm:$0xff]
    %v349 = vld [vmem:[#allocation8 + $0x558] sm:$0xff]
    %v350 = vld [vmem:[#allocation8 + $0x560] sm:$0xff]
    %v351 = vld [vmem:[#allocation8 + $0x568] sm:$0xff]
    %v352 = vld [vmem:[#allocation8 + $0x570] sm:$0xff]
    %v353 = vld [vmem:[#allocation8 + $0x578] sm:$0xff]
    %v354 = vld [vmem:[#allocation8 + $0x580] sm:$0xff]
    %v355 = vld [vmem:[#allocation8 + $0x588] sm:$0xff]
    %v356 = vld [vmem:[#allocation8 + $0x590] sm:$0xff]
    %v357 = vld [vmem:[#allocation8 + $0x598] sm:$0xff]
    %v358 = vld [vmem:[#allocation8 + $0x5a0] sm:$0xff]
    %v359 = vld [vmem:[#allocation8 + $0x5a8] sm:$0xff]
    %v360 = vld [vmem:[#allocation8 + $0x5b0] sm:$0xff]
    %v361 = vld [vmem:[#allocation8 + $0x5b8] sm:$0xff]
    %v362 = vld [vmem:[#allocation8 + $0x5c0] sm:$0xff]
    %v363 = vld [vmem:[#allocation8 + $0x5c8] sm:$0xff]
    %v364 = vld [vmem:[#allocation8 + $0x5d0] sm:$0xff]
    %v365 = vld [vmem:[#allocation8 + $0x5d8] sm:$0xff]
    %v366 = vld [vmem:[#allocation8 + $0x5e0] sm:$0xff]
    %v367 = vld [vmem:[#allocation8 + $0x5e8] sm:$0xff]
    %v368 = vld [vmem:[#allocation8 + $0x5f0] sm:$0xff]
    %v369 = vld [vmem:[#allocation8 + $0x5f8] sm:$0xff]
    %v370 = vld [vmem:[#allocation8 + $0x600] sm:$0xff]
    %v371 = vld [vmem:[#allocation8 + $0x608] sm:$0xff]
    %v372 = vld [vmem:[#allocation8 + $0x610] sm:$0xff]
    %v373 = vld [vmem:[#allocation8 + $0x618] sm:$0xff]
    %v374 = vld [vmem:[#allocation8 + $0x620] sm:$0xff]
    %v375 = vld [vmem:[#allocation8 + $0x628] sm:$0xff]
    %v376 = vld [vmem:[#allocation8 + $0x630] sm:$0xff]
    %v377 = vld [vmem:[#allocation8 + $0x638] sm:$0xff]
    %v378 = vld [vmem:[#allocation8 + $0x640] sm:$0xff]
    %v379 = vld [vmem:[#allocation8 + $0x648] sm:$0xff]
    %v380 = vld [vmem:[#allocation8 + $0x650] sm:$0xff]
    %v381 = vld [vmem:[#allocation8 + $0x658] sm:$0xff]
    %v382 = vld [vmem:[#allocation8 + $0x660] sm:$0xff]
    %v383 = vld [vmem:[#allocation8 + $0x668] sm:$0xff]
    %v384 = vld [vmem:[#allocation8 + $0x670] sm:$0xff]
    %v385 = vld [vmem:[#allocation8 + $0x678] sm:$0xff]
    %v386 = vld [vmem:[#allocation8 + $0x680] sm:$0xff]
    %v387 = vld [vmem:[#allocation8 + $0x688] sm:$0xff]
    %v388 = vld [vmem:[#allocation8 + $0x690] sm:$0xff]
    %v389 = vld [vmem:[#allocation8 + $0x698] sm:$0xff]
    %v390 = vld [vmem:[#allocation8 + $0x6a0] sm:$0xff]
    %v391 = vld [vmem:[#allocation8 + $0x6a8] sm:$0xff]
    %v392 = vld [vmem:[#allocation8 + $0x6b0] sm:$0xff]
    %v393 = vld [vmem:[#allocation8 + $0x6b8] sm:$0xff]
    %v394 = vld [vmem:[#allocation8 + $0x6c0] sm:$0xff]
    %v395 = vld [vmem:[#allocation8 + $0x6c8] sm:$0xff]
    %v396 = vld [vmem:[#allocation8 + $0x6d0] sm:$0xff]
    %v397 = vld [vmem:[#allocation8 + $0x6d8] sm:$0xff]
    %v398 = vld [vmem:[#allocation8 + $0x6e0] sm:$0xff]
    %v399 = vld [vmem:[#allocation8 + $0x6e8] sm:$0xff]
    %v400 = vld [vmem:[#allocation8 + $0x6f0] sm:$0xff]
    %v401 = vld [vmem:[#allocation8 + $0x6f8] sm:$0xff]
    %v402 = vld [vmem:[#allocation8 + $0x700] sm:$0xff]
    %v403 = vld [vmem:[#allocation8 + $0x708] sm:$0xff]
    %v404 = vld [vmem:[#allocation8 + $0x710] sm:$0xff]
    %v405 = vld [vmem:[#allocation8 + $0x718] sm:$0xff]
    %v406 = vld [vmem:[#allocation8 + $0x720] sm:$0xff]
    %v407 = vld [vmem:[#allocation8 + $0x728] sm:$0xff]
    %v408 = vld [vmem:[#allocation8 + $0x730] sm:$0xff]
    %v409 = vld [vmem:[#allocation8 + $0x738] sm:$0xff]
    %v410 = vld [vmem:[#allocation8 + $0x740] sm:$0xff]
    %v411 = vld [vmem:[#allocation8 + $0x748] sm:$0xff]
    %v412 = vld [vmem:[#allocation8 + $0x750] sm:$0xff]
    %v413 = vld [vmem:[#allocation8 + $0x758] sm:$0xff]
    %v414 = vld [vmem:[#allocation8 + $0x760] sm:$0xff]
    %v415 = vld [vmem:[#allocation8 + $0x768] sm:$0xff]
    %v416 = vld [vmem:[#allocation8 + $0x770] sm:$0xff]
    %v417 = vld [vmem:[#allocation8 + $0x778] sm:$0xff]
    %v418 = vld [vmem:[#allocation8 + $0x780] sm:$0xff]
    %v419 = vld [vmem:[#allocation8 + $0x788] sm:$0xff]
    %v420 = vld [vmem:[#allocation8 + $0x790] sm:$0xff]
    %v421 = vld [vmem:[#allocation8 + $0x798] sm:$0xff]
    %v422 = vld [vmem:[#allocation8 + $0x7a0] sm:$0xff]
    %v423 = vld [vmem:[#allocation8 + $0x7a8] sm:$0xff]
    %v424 = vld [vmem:[#allocation8 + $0x7b0] sm:$0xff]
    %v425 = vld [vmem:[#allocation8 + $0x7b8] sm:$0xff]
    %v426 = vld [vmem:[#allocation8 + $0x7c0] sm:$0xff]
    %v427 = vld [vmem:[#allocation8 + $0x7c8] sm:$0xff]
    %v428 = vld [vmem:[#allocation8 + $0x7d0] sm:$0xff]
    %v429 = vld [vmem:[#allocation8 + $0x7d8] sm:$0xff]
    %v430 = vld [vmem:[#allocation8 + $0x7e0] sm:$0xff]
    %v431 = vld [vmem:[#allocation8 + $0x7e8] sm:$0xff]
    %v432 = vld [vmem:[#allocation8 + $0x7f0] sm:$0xff]
    %v433 = vld [vmem:[#allocation8 + $0x7f8] sm:$0xff]
    %v434 = vld [vmem:[#allocation8 + $0x800] sm:$0xff]
    %v435 = vld [vmem:[#allocation8 + $0x808] sm:$0xff]
    %v436 = vld [vmem:[#allocation8 + $0x810] sm:$0xff]
    %v437 = vld [vmem:[#allocation8 + $0x818] sm:$0xff]
    %v438 = vld [vmem:[#allocation8 + $0x820] sm:$0xff]
    %v439 = vld [vmem:[#allocation8 + $0x828] sm:$0xff]
    %v440 = vld [vmem:[#allocation8 + $0x830] sm:$0xff]
    %v441 = vld [vmem:[#allocation8 + $0x838] sm:$0xff]
    %v442 = vld [vmem:[#allocation8 + $0x840] sm:$0xff]
    %v443 = vld [vmem:[#allocation8 + $0x848] sm:$0xff]
    %v444 = vld [vmem:[#allocation8 + $0x850] sm:$0xff]
    %v445 = vld [vmem:[#allocation8 + $0x858] sm:$0xff]
    %v446 = vld [vmem:[#allocation8 + $0x860] sm:$0xff]
    %v447 = vld [vmem:[#allocation8 + $0x868] sm:$0xff]
    %v448 = vld [vmem:[#allocation8 + $0x870] sm:$0xff]
    %v449 = vld [vmem:[#allocation8 + $0x878] sm:$0xff]
    %v450 = vld [vmem:[#allocation8 + $0x880] sm:$0xff]
    %v451 = vld [vmem:[#allocation8 + $0x888] sm:$0xff]
    %v452 = vld [vmem:[#allocation8 + $0x890] sm:$0xff]
    %v453 = vld [vmem:[#allocation8 + $0x898] sm:$0xff]
    %v454 = vld [vmem:[#allocation8 + $0x8a0] sm:$0xff]
    %v455 = vld [vmem:[#allocation8 + $0x8a8] sm:$0xff]
    %v456 = vld [vmem:[#allocation8 + $0x8b0] sm:$0xff]
    %v457 = vld [vmem:[#allocation8 + $0x8b8] sm:$0xff]
    %v458 = vld [vmem:[#allocation8 + $0x8c0] sm:$0xff]
    %v459 = vld [vmem:[#allocation8 + $0x8c8] sm:$0xff]
    %v460 = vld [vmem:[#allocation8 + $0x8d0] sm:$0xff]
    %v461 = vld [vmem:[#allocation8 + $0x8d8] sm:$0xff]
    %v462 = vld [vmem:[#allocation8 + $0x8e0] sm:$0xff]
    %v463 = vld [vmem:[#allocation8 + $0x8e8] sm:$0xff]
    %v464 = vld [vmem:[#allocation8 + $0x8f0] sm:$0xff]
    %v465 = vld [vmem:[#allocation8 + $0x8f8] sm:$0xff]
    %v466 = vld [vmem:[#allocation8 + $0x900] sm:$0xff]
    %v467 = vld [vmem:[#allocation8 + $0x908] sm:$0xff]
    %v468 = vld [vmem:[#allocation8 + $0x910] sm:$0xff]
    %v469 = vld [vmem:[#allocation8 + $0x918] sm:$0xff]
    %v470 = vld [vmem:[#allocation8 + $0x920] sm:$0xff]
    %v471 = vld [vmem:[#allocation8 + $0x928] sm:$0xff]
    %v472 = vld [vmem:[#allocation8 + $0x930] sm:$0xff]
    %v473 = vld [vmem:[#allocation8 + $0x938] sm:$0xff]
    %v474 = vld [vmem:[#allocation8 + $0x940] sm:$0xff]
    %v475 = vld [vmem:[#allocation8 + $0x948] sm:$0xff]
    %v476 = vld [vmem:[#allocation8 + $0x950] sm:$0xff]
    %v477 = vld [vmem:[#allocation8 + $0x958] sm:$0xff]
    %v478 = vld [vmem:[#allocation8 + $0x960] sm:$0xff]
    %v479 = vld [vmem:[#allocation8 + $0x968] sm:$0xff]
    %v480 = vld [vmem:[#allocation8 + $0x970] sm:$0xff]
    %v481 = vld [vmem:[#allocation8 + $0x978] sm:$0xff]
    %v482 = vld [vmem:[#allocation8 + $0x980] sm:$0xff]
    %v483 = vld [vmem:[#allocation8 + $0x988] sm:$0xff]
    %v484 = vld [vmem:[#allocation8 + $0x990] sm:$0xff]
    %v485 = vld [vmem:[#allocation8 + $0x998] sm:$0xff]
    %v486 = vld [vmem:[#allocation8 + $0x9a0] sm:$0xff]
    %v487 = vld [vmem:[#allocation8 + $0x9a8] sm:$0xff]
    %v488 = vld [vmem:[#allocation8 + $0x9b0] sm:$0xff]
    %v489 = vld [vmem:[#allocation8 + $0x9b8] sm:$0xff]
    %v490 = vld [vmem:[#allocation8 + $0x9c0] sm:$0xff]
    %v491 = vld [vmem:[#allocation8 + $0x9c8] sm:$0xff]
    %v492 = vld [vmem:[#allocation8 + $0x9d0] sm:$0xff]
    %v493 = vld [vmem:[#allocation8 + $0x9d8] sm:$0xff]
    %v494 = vld [vmem:[#allocation8 + $0x9e0] sm:$0xff]
    %v495 = vld [vmem:[#allocation8 + $0x9e8] sm:$0xff]
    %v496 = vld [vmem:[#allocation8 + $0x9f0] sm:$0xff]
    %v497 = vld [vmem:[#allocation8 + $0x9f8] sm:$0xff]
    %v498 = vld [vmem:[#allocation8 + $0xa00] sm:$0xff]
    %v499 = vld [vmem:[#allocation8 + $0xa08] sm:$0xff]
    %v500 = vld [vmem:[#allocation8 + $0xa10] sm:$0xff]
    %v501 = vld [vmem:[#allocation8 + $0xa18] sm:$0xff]
    %v502 = vld [vmem:[#allocation8 + $0xa20] sm:$0xff]
    %v503 = vld [vmem:[#allocation8 + $0xa28] sm:$0xff]
    %v504 = vld [vmem:[#allocation8 + $0xa30] sm:$0xff]
    %v505 = vld [vmem:[#allocation8 + $0xa38] sm:$0xff]
    %v506 = vld [vmem:[#allocation8 + $0xa40] sm:$0xff]
    %v507 = vld [vmem:[#allocation8 + $0xa48] sm:$0xff]
    %v508 = vld [vmem:[#allocation8 + $0xa50] sm:$0xff]
    %v509 = vld [vmem:[#allocation8 + $0xa58] sm:$0xff]
    %v510 = vld [vmem:[#allocation8 + $0xa60] sm:$0xff]
    %v511 = vld [vmem:[#allocation8 + $0xa68] sm:$0xff]
    %v512 = vld [vmem:[#allocation8 + $0xa70] sm:$0xff]
    %v513 = vld [vmem:[#allocation8 + $0xa78] sm:$0xff]
    %v514 = vld [vmem:[#allocation8 + $0xa80] sm:$0xff]
    %v515 = vld [vmem:[#allocation8 + $0xa88] sm:$0xff]
    %v516 = vld [vmem:[#allocation8 + $0xa90] sm:$0xff]
    %v517 = vld [vmem:[#allocation8 + $0xa98] sm:$0xff]
    %v518 = vld [vmem:[#allocation8 + $0xaa0] sm:$0xff]
    %v519 = vld [vmem:[#allocation8 + $0xaa8] sm:$0xff]
    %v520 = vld [vmem:[#allocation8 + $0xab0] sm:$0xff]
    %v521 = vld [vmem:[#allocation8 + $0xab8] sm:$0xff]
    %v522 = vld [vmem:[#allocation8 + $0xac0] sm:$0xff]
    %v523 = vld [vmem:[#allocation8 + $0xac8] sm:$0xff]
    %v524 = vld [vmem:[#allocation8 + $0xad0] sm:$0xff]
    %v525 = vld [vmem:[#allocation8 + $0xad8] sm:$0xff]
    %v526 = vld [vmem:[#allocation8 + $0xae0] sm:$0xff]
    %v527 = vld [vmem:[#allocation8 + $0xae8] sm:$0xff]
    %v528 = vld [vmem:[#allocation8 + $0xaf0] sm:$0xff]
    %v529 = vld [vmem:[#allocation8 + $0xaf8] sm:$0xff]
    %v530 = vld [vmem:[#allocation8 + $0xb00] sm:$0xff]
    %v531 = vld [vmem:[#allocation8 + $0xb08] sm:$0xff]
    %v532 = vld [vmem:[#allocation8 + $0xb10] sm:$0xff]
    %v533 = vld [vmem:[#allocation8 + $0xb18] sm:$0xff]
    %v534 = vld [vmem:[#allocation8 + $0xb20] sm:$0xff]
    %v535 = vld [vmem:[#allocation8 + $0xb28] sm:$0xff]
    %v536 = vld [vmem:[#allocation8 + $0xb30] sm:$0xff]
    %v537 = vld [vmem:[#allocation8 + $0xb38] sm:$0xff]
    %v538 = vld [vmem:[#allocation8 + $0xb40] sm:$0xff]
    %v539 = vld [vmem:[#allocation8 + $0xb48] sm:$0xff]
    %v540 = vld [vmem:[#allocation8 + $0xb50] sm:$0xff]
    %v541 = vld [vmem:[#allocation8 + $0xb58] sm:$0xff]
    %v542 = vld [vmem:[#allocation8 + $0xb60] sm:$0xff]
    %v543 = vld [vmem:[#allocation8 + $0xb68] sm:$0xff]
    %v544 = vld [vmem:[#allocation8 + $0xb70] sm:$0xff]
    %v545 = vld [vmem:[#allocation8 + $0xb78] sm:$0xff]
    %v546 = vld [vmem:[#allocation8 + $0xb80] sm:$0xff]
    %v547 = vld [vmem:[#allocation8 + $0xb88] sm:$0xff]
    %v548 = vld [vmem:[#allocation8 + $0xb90] sm:$0xff]
    %v549 = vld [vmem:[#allocation8 + $0xb98] sm:$0xff]
    %v550 = vld [vmem:[#allocation8 + $0xba0] sm:$0xff]
    %v551 = vld [vmem:[#allocation8 + $0xba8] sm:$0xff]
    %v552 = vld [vmem:[#allocation8 + $0xbb0] sm:$0xff]
    %v553 = vld [vmem:[#allocation8 + $0xbb8] sm:$0xff]
    %v554 = vld [vmem:[#allocation8 + $0xbc0] sm:$0xff]
    %v555 = vld [vmem:[#allocation8 + $0xbc8] sm:$0xff]
    %v556 = vld [vmem:[#allocation8 + $0xbd0] sm:$0xff]
    %v557 = vld [vmem:[#allocation8 + $0xbd8] sm:$0xff]
    %v558 = vld [vmem:[#allocation8 + $0xbe0] sm:$0xff]
    %v559 = vld [vmem:[#allocation8 + $0xbe8] sm:$0xff]
    %v560 = vld [vmem:[#allocation8 + $0xbf0] sm:$0xff]
    %v561 = vld [vmem:[#allocation8 + $0xbf8] sm:$0xff]
    %v562 = vld [vmem:[#allocation8 + $0xc00] sm:$0xff]
    %v563 = vld [vmem:[#allocation8 + $0xc08] sm:$0xff]
    %v564 = vld [vmem:[#allocation8 + $0xc10] sm:$0xff]
    %v565 = vld [vmem:[#allocation8 + $0xc18] sm:$0xff]
    %v566 = vld [vmem:[#allocation8 + $0xc20] sm:$0xff]
    %v567 = vld [vmem:[#allocation8 + $0xc28] sm:$0xff]
    %v568 = vld [vmem:[#allocation8 + $0xc30] sm:$0xff]
    %v569 = vld [vmem:[#allocation8 + $0xc38] sm:$0xff]
    %v570 = vld [vmem:[#allocation8 + $0xc40] sm:$0xff]
    %v571 = vld [vmem:[#allocation8 + $0xc48] sm:$0xff]
    %v572 = vld [vmem:[#allocation8 + $0xc50] sm:$0xff]
    %v573 = vld [vmem:[#allocation8 + $0xc58] sm:$0xff]
    %v574 = vld [vmem:[#allocation8 + $0xc60] sm:$0xff]
    %v575 = vld [vmem:[#allocation8 + $0xc68] sm:$0xff]
    %v576 = vld [vmem:[#allocation8 + $0xc70] sm:$0xff]
    %v577 = vld [vmem:[#allocation8 + $0xc78] sm:$0xff]
    %v578 = vld [vmem:[#allocation8 + $0xc80] sm:$0xff]
    %v579 = vld [vmem:[#allocation8 + $0xc88] sm:$0xff]
    %v580 = vld [vmem:[#allocation8 + $0xc90] sm:$0xff]
    %v581 = vld [vmem:[#allocation8 + $0xc98] sm:$0xff]
    %v582 = vld [vmem:[#allocation8 + $0xca0] sm:$0xff]
    %v583 = vld [vmem:[#allocation8 + $0xca8] sm:$0xff]
    %v584 = vld [vmem:[#allocation8 + $0xcb0] sm:$0xff]
    %v585 = vld [vmem:[#allocation8 + $0xcb8] sm:$0xff]
    %v586 = vld [vmem:[#allocation8 + $0xcc0] sm:$0xff]
    %v587 = vld [vmem:[#allocation8 + $0xcc8] sm:$0xff]
    %v588 = vld [vmem:[#allocation8 + $0xcd0] sm:$0xff]
    %v589 = vld [vmem:[#allocation8 + $0xcd8] sm:$0xff]
    %v590 = vld [vmem:[#allocation8 + $0xce0] sm:$0xff]
    %v591 = vld [vmem:[#allocation8 + $0xce8] sm:$0xff]
    %v592 = vld [vmem:[#allocation8 + $0xcf0] sm:$0xff]
    %v593 = vld [vmem:[#allocation8 + $0xcf8] sm:$0xff]
    %v594 = vld [vmem:[#allocation8 + $0xd00] sm:$0xff]
    %v595 = vld [vmem:[#allocation8 + $0xd08] sm:$0xff]
    %v596 = vld [vmem:[#allocation8 + $0xd10] sm:$0xff]
    %v597 = vld [vmem:[#allocation8 + $0xd18] sm:$0xff]
    %v598 = vld [vmem:[#allocation8 + $0xd20] sm:$0xff]
    %v599 = vld [vmem:[#allocation8 + $0xd28] sm:$0xff]
    %v600 = vld [vmem:[#allocation8 + $0xd30] sm:$0xff]
    %v601 = vld [vmem:[#allocation8 + $0xd38] sm:$0xff]
    %v602 = vld [vmem:[#allocation8 + $0xd40] sm:$0xff]
    %v603 = vld [vmem:[#allocation8 + $0xd48] sm:$0xff]
    %v604 = vld [vmem:[#allocation8 + $0xd50] sm:$0xff]
    %v605 = vld [vmem:[#allocation8 + $0xd58] sm:$0xff]
    %v606 = vld [vmem:[#allocation8 + $0xd60] sm:$0xff]
    %v607 = vld [vmem:[#allocation8 + $0xd68] sm:$0xff]
    %v608 = vld [vmem:[#allocation8 + $0xd70] sm:$0xff]
    %v609 = vld [vmem:[#allocation8 + $0xd78] sm:$0xff]
    %v610 = vld [vmem:[#allocation8 + $0xd80] sm:$0xff]
    %v611 = vld [vmem:[#allocation8 + $0xd88] sm:$0xff]
    %v612 = vld [vmem:[#allocation8 + $0xd90] sm:$0xff]
    %v613 = vld [vmem:[#allocation8 + $0xd98] sm:$0xff]
    %v614 = vld [vmem:[#allocation8 + $0xda0] sm:$0xff]
    %v615 = vld [vmem:[#allocation8 + $0xda8] sm:$0xff]
    %v616 = vld [vmem:[#allocation8 + $0xdb0] sm:$0xff]
    %v617 = vld [vmem:[#allocation8 + $0xdb8] sm:$0xff]
    %v618 = vld [vmem:[#allocation8 + $0xdc0] sm:$0xff]
    %v619 = vld [vmem:[#allocation8 + $0xdc8] sm:$0xff]
    %v620 = vld [vmem:[#allocation8 + $0xdd0] sm:$0xff]
    %v621 = vld [vmem:[#allocation8 + $0xdd8] sm:$0xff]
    %v622 = vld [vmem:[#allocation8 + $0xde0] sm:$0xff]
    %v623 = vld [vmem:[#allocation8 + $0xde8] sm:$0xff]
    %v624 = vld [vmem:[#allocation8 + $0xdf0] sm:$0xff]
    %v625 = vld [vmem:[#allocation8 + $0xdf8] sm:$0xff]
    %v626 = vld [vmem:[#allocation8 + $0xe00] sm:$0xff]
    %v627 = vld [vmem:[#allocation8 + $0xe08] sm:$0xff]
    %v628 = vld [vmem:[#allocation8 + $0xe10] sm:$0xff]
    %v629 = vld [vmem:[#allocation8 + $0xe18] sm:$0xff]
    %v630 = vld [vmem:[#allocation8 + $0xe20] sm:$0xff]
    %v631 = vld [vmem:[#allocation8 + $0xe28] sm:$0xff]
    %v632 = vld [vmem:[#allocation8 + $0xe30] sm:$0xff]
    %v633 = vld [vmem:[#allocation8 + $0xe38] sm:$0xff]
    %v634 = vld [vmem:[#allocation8 + $0xe40] sm:$0xff]
    %v635 = vld [vmem:[#allocation8 + $0xe48] sm:$0xff]
    %v636 = vld [vmem:[#allocation8 + $0xe50] sm:$0xff]
    %v637 = vld [vmem:[#allocation8 + $0xe58] sm:$0xff]
    %v638 = vld [vmem:[#allocation8 + $0xe60] sm:$0xff]
    %v639 = vld [vmem:[#allocation8 + $0xe68] sm:$0xff]
    %v640 = vld [vmem:[#allocation8 + $0xe70] sm:$0xff]
    %v641 = vld [vmem:[#allocation8 + $0xe78] sm:$0xff]
    %v642 = vld [vmem:[#allocation8 + $0xe80] sm:$0xff]
    %v643 = vld [vmem:[#allocation8 + $0xe88] sm:$0xff]
    %v644 = vld [vmem:[#allocation8 + $0xe90] sm:$0xff]
    %v645 = vld [vmem:[#allocation8 + $0xe98] sm:$0xff]
    %v646 = vld [vmem:[#allocation8 + $0xea0] sm:$0xff]
    %v647 = vld [vmem:[#allocation8 + $0xea8] sm:$0xff]
    %v648 = vld [vmem:[#allocation8 + $0xeb0] sm:$0xff]
    %v649 = vld [vmem:[#allocation8 + $0xeb8] sm:$0xff]
    %v650 = vld [vmem:[#allocation8 + $0xec0] sm:$0xff]
    %v651 = vld [vmem:[#allocation8 + $0xec8] sm:$0xff]
    %v652 = vld [vmem:[#allocation8 + $0xed0] sm:$0xff]
    %v653 = vld [vmem:[#allocation8 + $0xed8] sm:$0xff]
    %v654 = vld [vmem:[#allocation8 + $0xee0] sm:$0xff]
    %v655 = vld [vmem:[#allocation8 + $0xee8] sm:$0xff]
    %v656 = vld [vmem:[#allocation8 + $0xef0] sm:$0xff]
    %v657 = vld [vmem:[#allocation8 + $0xef8] sm:$0xff]
    %v658 = vld [vmem:[#allocation8 + $0xf00] sm:$0xff]
    %v659 = vld [vmem:[#allocation8 + $0xf08] sm:$0xff]
    %v660 = vld [vmem:[#allocation8 + $0xf10] sm:$0xff]
    %v661 = vld [vmem:[#allocation8 + $0xf18] sm:$0xff]
    %v662 = vld [vmem:[#allocation8 + $0xf20] sm:$0xff]
    %v663 = vld [vmem:[#allocation8 + $0xf28] sm:$0xff]
    %v664 = vld [vmem:[#allocation8 + $0xf30] sm:$0xff]
    %v665 = vld [vmem:[#allocation8 + $0xf38] sm:$0xff]
    %v666 = vld [vmem:[#allocation8 + $0xf40] sm:$0xff]
    %v667 = vld [vmem:[#allocation8 + $0xf48] sm:$0xff]
    %v668 = vld [vmem:[#allocation8 + $0xf50] sm:$0xff]
    %v669 = vld [vmem:[#allocation8 + $0xf58] sm:$0xff]
    %v670 = vld [vmem:[#allocation8 + $0xf60] sm:$0xff]
    %v671 = vld [vmem:[#allocation8 + $0xf68] sm:$0xff]
    %v672 = vld [vmem:[#allocation8 + $0xf70] sm:$0xff]
    %v673 = vld [vmem:[#allocation8 + $0xf78] sm:$0xff]
    %v674 = vld [vmem:[#allocation8 + $0xf80] sm:$0xff]
    %v675 = vld [vmem:[#allocation8 + $0xf88] sm:$0xff]
    %v676 = vld [vmem:[#allocation8 + $0xf90] sm:$0xff]
    %v677 = vld [vmem:[#allocation8 + $0xf98] sm:$0xff]
    %v678 = vld [vmem:[#allocation8 + $0xfa0] sm:$0xff]
    %v679 = vld [vmem:[#allocation8 + $0xfa8] sm:$0xff]
    %v680 = vld [vmem:[#allocation8 + $0xfb0] sm:$0xff]
    %v681 = vld [vmem:[#allocation8 + $0xfb8] sm:$0xff]
    %v682 = vld [vmem:[#allocation8 + $0xfc0] sm:$0xff]
    %v683 = vld [vmem:[#allocation8 + $0xfc8] sm:$0xff]
    %v684 = vld [vmem:[#allocation8 + $0xfd0] sm:$0xff]
    %v685 = vld [vmem:[#allocation8 + $0xfd8] sm:$0xff]
    %v686 = vld [vmem:[#allocation8 + $0xfe0] sm:$0xff]
    %v687 = vld [vmem:[#allocation8 + $0xfe8] sm:$0xff]
    %v688 = vld [vmem:[#allocation8 + $0xff0] sm:$0xff]
    %v689 = vld [vmem:[#allocation8 + $0xff8] sm:$0xff]
    %v690 = vld [vmem:[#allocation8 + $0x1000] sm:$0xff]
    %v691 = vld [vmem:[#allocation8 + $0x1008] sm:$0xff]
    %v692 = vld [vmem:[#allocation8 + $0x1010] sm:$0xff]
    %v693 = vld [vmem:[#allocation8 + $0x1018] sm:$0xff]
    %v694 = vld [vmem:[#allocation8 + $0x1020] sm:$0xff]
    %v695 = vld [vmem:[#allocation8 + $0x1028] sm:$0xff]
    %v696 = vld [vmem:[#allocation8 + $0x1030] sm:$0xff]
    %v697 = vld [vmem:[#allocation8 + $0x1038] sm:$0xff]
    %v698 = vld [vmem:[#allocation8 + $0x1040] sm:$0xff]
    %v699 = vld [vmem:[#allocation8 + $0x1048] sm:$0xff]
    %v700 = vld [vmem:[#allocation8 + $0x1050] sm:$0xff]
    %v701 = vld [vmem:[#allocation8 + $0x1058] sm:$0xff]
    %v702 = vld [vmem:[#allocation8 + $0x1060] sm:$0xff]
    %v703 = vld [vmem:[#allocation8 + $0x1068] sm:$0xff]
    %v704 = vld [vmem:[#allocation8 + $0x1070] sm:$0xff]
    %v705 = vld [vmem:[#allocation8 + $0x1078] sm:$0xff]
    %v706 = vld [vmem:[#allocation8 + $0x1080] sm:$0xff]
    %v707 = vld [vmem:[#allocation8 + $0x1088] sm:$0xff]
    %v708 = vld [vmem:[#allocation8 + $0x1090] sm:$0xff]
    %v709 = vld [vmem:[#allocation8 + $0x1098] sm:$0xff]
    %v710 = vld [vmem:[#allocation8 + $0x10a0] sm:$0xff]
    %v711 = vld [vmem:[#allocation8 + $0x10a8] sm:$0xff]
    %v712 = vld [vmem:[#allocation8 + $0x10b0] sm:$0xff]
    %v713 = vld [vmem:[#allocation8 + $0x10b8] sm:$0xff]
    %v714 = vld [vmem:[#allocation8 + $0x10c0] sm:$0xff]
    %v715 = vld [vmem:[#allocation8 + $0x10c8] sm:$0xff]
    %v716 = vld [vmem:[#allocation8 + $0x10d0] sm:$0xff]
    %v717 = vld [vmem:[#allocation8 + $0x10d8] sm:$0xff]
    %v718 = vld [vmem:[#allocation8 + $0x10e0] sm:$0xff]
    %v719 = vld [vmem:[#allocation8 + $0x10e8] sm:$0xff]
    %v720 = vld [vmem:[#allocation8 + $0x10f0] sm:$0xff]
    %v721 = vld [vmem:[#allocation8 + $0x10f8] sm:$0xff]
    %v722 = vld [vmem:[#allocation8 + $0x1100] sm:$0xff]
    %v723 = vld [vmem:[#allocation8 + $0x1108] sm:$0xff]
    %v724 = vld [vmem:[#allocation8 + $0x1110] sm:$0xff]
    %v725 = vld [vmem:[#allocation8 + $0x1118] sm:$0xff]
    %v726 = vld [vmem:[#allocation8 + $0x1120] sm:$0xff]
    %v727 = vld [vmem:[#allocation8 + $0x1128] sm:$0xff]
    %v728 = vld [vmem:[#allocation8 + $0x1130] sm:$0xff]
    %v729 = vld [vmem:[#allocation8 + $0x1138] sm:$0xff]
    %v730 = vld [vmem:[#allocation8 + $0x1140] sm:$0xff]
    %v731 = vld [vmem:[#allocation8 + $0x1148] sm:$0xff]
    %v732 = vld [vmem:[#allocation8 + $0x1150] sm:$0xff]
    %v733 = vld [vmem:[#allocation8 + $0x1158] sm:$0xff]
    %v734 = vld [vmem:[#allocation8 + $0x1160] sm:$0xff]
    %v735 = vld [vmem:[#allocation8 + $0x1168] sm:$0xff]
    %v736 = vld [vmem:[#allocation8 + $0x1170] sm:$0xff]
    %v737 = vld [vmem:[#allocation8 + $0x1178] sm:$0xff]
    %v738 = vld [vmem:[#allocation8 + $0x1180] sm:$0xff]
    %v739 = vld [vmem:[#allocation8 + $0x1188] sm:$0xff]
    %v740 = vld [vmem:[#allocation8 + $0x1190] sm:$0xff]
    %v741 = vld [vmem:[#allocation8 + $0x1198] sm:$0xff]
    %v742 = vld [vmem:[#allocation8 + $0x11a0] sm:$0xff]
    %v743 = vld [vmem:[#allocation8 + $0x11a8] sm:$0xff]
    %v744 = vld [vmem:[#allocation8 + $0x11b0] sm:$0xff]
    %v745 = vld [vmem:[#allocation8 + $0x11b8] sm:$0xff]
    %v746 = vld [vmem:[#allocation8 + $0x11c0] sm:$0xff]
    %v747 = vld [vmem:[#allocation8 + $0x11c8] sm:$0xff]
    %v748 = vld [vmem:[#allocation8 + $0x11d0] sm:$0xff]
    %v749 = vld [vmem:[#allocation8 + $0x11d8] sm:$0xff]
    %v750 = vld [vmem:[#allocation8 + $0x11e0] sm:$0xff]
    %v751 = vld [vmem:[#allocation8 + $0x11e8] sm:$0xff]
    %v752 = vld [vmem:[#allocation8 + $0x11f0] sm:$0xff]
    %v753 = vld [vmem:[#allocation8 + $0x11f8] sm:$0xff]
    %754 = vmatpush.msra.mxu0 %v358
    %755 = vmatpush.msra.mxu0 %v346
    %756 = vmatpush.msra.mxu0 %v334
    %757 = vmatpush.msra.mxu0 %v322
    %758 = vmatpush.msra.mxu0 %v310
    %759 = vmatpush.msra.mxu0 %v298
    %760 = vmatpush.msra.mxu0 %v286
    %761 = vmatpush.msra.mxu0 %v274
    %762 = vmatpush.msra.mxu0 %v262
    %763 = vmatpush.msra.mxu0 %v250
    %764 = vmatpush.msra.mxu0 %v238
    %765 = vmatpush.msra.mxu0 %v226
    %766 = vmatpush.msra.mxu0 %v214
    %767 = vmatpush.msra.mxu0 %v202
    %768 = vmatpush.msra.mxu0 %v190
    %769 = vmatpush.msra.mxu0 %v178
    %770 = vmatmul.f32.gmra.mxu0 %v172
    %v771 = vpop.f32.mrf.mxu0
    %v772 = vadd.f32 0.0, %v771
    %773 = vmatmul.f32.gmra.mxu0 %v175
    %v774 = vpop.f32.mrf.mxu0
    %v775 = vadd.f32 0.0, %v774
    %776 = vdwg.mxu0
    %777 = vmatpush.msra.mxu0 %v550
    %778 = vmatpush.msra.mxu0 %v538
    %779 = vmatpush.msra.mxu0 %v526
    %780 = vmatpush.msra.mxu0 %v514
    %781 = vmatpush.msra.mxu0 %v502
    %782 = vmatpush.msra.mxu0 %v490
    %783 = vmatpush.msra.mxu0 %v478
    %784 = vmatpush.msra.mxu0 %v466
    %785 = vmatpush.msra.mxu0 %v454
    %786 = vmatpush.msra.mxu0 %v442
    %787 = vmatpush.msra.mxu0 %v430
    %788 = vmatpush.msra.mxu0 %v418
    %789 = vmatpush.msra.mxu0 %v406
    %790 = vmatpush.msra.mxu0 %v394
    %791 = vmatpush.msra.mxu0 %v382
    %792 = vmatpush.msra.mxu0 %v370
    %793 = vmatmul.f32.gmra.mxu0 %v173
    %v794 = vpop.f32.mrf.mxu0
    %v795 = vadd.f32 %v772, %v794
    %796 = vmatmul.f32.gmra.mxu0 %v176
    %v797 = vpop.f32.mrf.mxu0
    %v798 = vadd.f32 %v775, %v797
    %799 = vdwg.mxu0
    %800 = vmatpush.msra.mxu0 %v742
    %801 = vmatpush.msra.mxu0 %v730
    %802 = vmatpush.msra.mxu0 %v718
    %803 = vmatpush.msra.mxu0 %v706
    %804 = vmatpush.msra.mxu0 %v694
    %805 = vmatpush.msra.mxu0 %v682
    %806 = vmatpush.msra.mxu0 %v670
    %807 = vmatpush.msra.mxu0 %v658
    %808 = vmatpush.msra.mxu0 %v646
    %809 = vmatpush.msra.mxu0 %v634
    %810 = vmatpush.msra.mxu0 %v622
    %811 = vmatpush.msra.mxu0 %v610
    %812 = vmatpush.msra.mxu0 %v598
    %813 = vmatpush.msra.mxu0 %v586
    %814 = vmatpush.msra.mxu0 %v574
    %815 = vmatpush.msra.mxu0 %v562
    %816 = vmatmul.f32.gmra.mxu0 %v174
    %v817 = vpop.f32.mrf.mxu0
    %v818 = vadd.f32 %v795, %v817
    %819 = vmatmul.f32.gmra.mxu0 %v177
    %v820 = vpop.f32.mrf.mxu0
    %v821 = vadd.f32 %v798, %v820
    %822 = vdwg.mxu0
    %823 = vmatpush.msra.mxu0 %v359
    %824 = vmatpush.msra.mxu0 %v347
    %825 = vmatpush.msra.mxu0 %v335
    %826 = vmatpush.msra.mxu0 %v323
    %827 = vmatpush.msra.mxu0 %v311
    %828 = vmatpush.msra.mxu0 %v299
    %829 = vmatpush.msra.mxu0 %v287
    %830 = vmatpush.msra.mxu0 %v275
    %831 = vmatpush.msra.mxu0 %v263
    %832 = vmatpush.msra.mxu0 %v251
    %833 = vmatpush.msra.mxu0 %v239
    %834 = vmatpush.msra.mxu0 %v227
    %835 = vmatpush.msra.mxu0 %v215
    %836 = vmatpush.msra.mxu0 %v203
    %837 = vmatpush.msra.mxu0 %v191
    %838 = vmatpush.msra.mxu0 %v179
    %839 = vmatmul.f32.gmra.mxu0 %v172
    %v840 = vpop.f32.mrf.mxu0
    %v841 = vadd.f32 0.0, %v840
    %842 = vmatmul.f32.gmra.mxu0 %v175
    %v843 = vpop.f32.mrf.mxu0
    %v844 = vadd.f32 0.0, %v843
    %845 = vdwg.mxu0
    %846 = vmatpush.msra.mxu0 %v551
    %847 = vmatpush.msra.mxu0 %v539
    %848 = vmatpush.msra.mxu0 %v527
    %849 = vmatpush.msra.mxu0 %v515
    %850 = vmatpush.msra.mxu0 %v503
    %851 = vmatpush.msra.mxu0 %v491
    %852 = vmatpush.msra.mxu0 %v479
    %853 = vmatpush.msra.mxu0 %v467
    %854 = vmatpush.msra.mxu0 %v455
    %855 = vmatpush.msra.mxu0 %v443
    %856 = vmatpush.msra.mxu0 %v431
    %857 = vmatpush.msra.mxu0 %v419
    %858 = vmatpush.msra.mxu0 %v407
    %859 = vmatpush.msra.mxu0 %v395
    %860 = vmatpush.msra.mxu0 %v383
    %861 = vmatpush.msra.mxu0 %v371
    %862 = vmatmul.f32.gmra.mxu0 %v173
    %v863 = vpop.f32.mrf.mxu0
    %v864 = vadd.f32 %v841, %v863
    %865 = vmatmul.f32.gmra.mxu0 %v176
    %v866 = vpop.f32.mrf.mxu0
    %v867 = vadd.f32 %v844, %v866
    %868 = vdwg.mxu0
    %869 = vmatpush.msra.mxu0 %v743
    %870 = vmatpush.msra.mxu0 %v731
    %871 = vmatpush.msra.mxu0 %v719
    %872 = vmatpush.msra.mxu0 %v707
    %873 = vmatpush.msra.mxu0 %v695
    %874 = vmatpush.msra.mxu0 %v683
    %875 = vmatpush.msra.mxu0 %v671
    %876 = vmatpush.msra.mxu0 %v659
    %877 = vmatpush.msra.mxu0 %v647
    %878 = vmatpush.msra.mxu0 %v635
    %879 = vmatpush.msra.mxu0 %v623
    %880 = vmatpush.msra.mxu0 %v611
    %881 = vmatpush.msra.mxu0 %v599
    %882 = vmatpush.msra.mxu0 %v587
    %883 = vmatpush.msra.mxu0 %v575
    %884 = vmatpush.msra.mxu0 %v563
    %885 = vmatmul.f32.gmra.mxu0 %v174
    %v886 = vpop.f32.mrf.mxu0
    %v887 = vadd.f32 %v864, %v886
    %888 = vmatmul.f32.gmra.mxu0 %v177
    %v889 = vpop.f32.mrf.mxu0
    %v890 = vadd.f32 %v867, %v889
    %891 = vdwg.mxu0
    %892 = vmatpush.msra.mxu0 %v360
    %893 = vmatpush.msra.mxu0 %v348
    %894 = vmatpush.msra.mxu0 %v336
    %895 = vmatpush.msra.mxu0 %v324
    %896 = vmatpush.msra.mxu0 %v312
    %897 = vmatpush.msra.mxu0 %v300
    %898 = vmatpush.msra.mxu0 %v288
    %899 = vmatpush.msra.mxu0 %v276
    %900 = vmatpush.msra.mxu0 %v264
    %901 = vmatpush.msra.mxu0 %v252
    %902 = vmatpush.msra.mxu0 %v240
    %903 = vmatpush.msra.mxu0 %v228
    %904 = vmatpush.msra.mxu0 %v216
    %905 = vmatpush.msra.mxu0 %v204
    %906 = vmatpush.msra.mxu0 %v192
    %907 = vmatpush.msra.mxu0 %v180
    %908 = vmatmul.f32.gmra.mxu0 %v172
    %v909 = vpop.f32.mrf.mxu0
    %v910 = vadd.f32 0.0, %v909
    %911 = vmatmul.f32.gmra.mxu0 %v175
    %v912 = vpop.f32.mrf.mxu0
    %v913 = vadd.f32 0.0, %v912
    %914 = vdwg.mxu0
    %915 = vmatpush.msra.mxu0 %v552
    %916 = vmatpush.msra.mxu0 %v540
    %917 = vmatpush.msra.mxu0 %v528
    %918 = vmatpush.msra.mxu0 %v516
    %919 = vmatpush.msra.mxu0 %v504
    %920 = vmatpush.msra.mxu0 %v492
    %921 = vmatpush.msra.mxu0 %v480
    %922 = vmatpush.msra.mxu0 %v468
    %923 = vmatpush.msra.mxu0 %v456
    %924 = vmatpush.msra.mxu0 %v444
    %925 = vmatpush.msra.mxu0 %v432
    %926 = vmatpush.msra.mxu0 %v420
    %927 = vmatpush.msra.mxu0 %v408
    %928 = vmatpush.msra.mxu0 %v396
    %929 = vmatpush.msra.mxu0 %v384
    %930 = vmatpush.msra.mxu0 %v372
    %931 = vmatmul.f32.gmra.mxu0 %v173
    %v932 = vpop.f32.mrf.mxu0
    %v933 = vadd.f32 %v910, %v932
    %934 = vmatmul.f32.gmra.mxu0 %v176
    %v935 = vpop.f32.mrf.mxu0
    %v936 = vadd.f32 %v913, %v935
    %937 = vdwg.mxu0
    %938 = vmatpush.msra.mxu0 %v744
    %939 = vmatpush.msra.mxu0 %v732
    %940 = vmatpush.msra.mxu0 %v720
    %941 = vmatpush.msra.mxu0 %v708
    %942 = vmatpush.msra.mxu0 %v696
    %943 = vmatpush.msra.mxu0 %v684
    %944 = vmatpush.msra.mxu0 %v672
    %945 = vmatpush.msra.mxu0 %v660
    %946 = vmatpush.msra.mxu0 %v648
    %947 = vmatpush.msra.mxu0 %v636
    %948 = vmatpush.msra.mxu0 %v624
    %949 = vmatpush.msra.mxu0 %v612
    %950 = vmatpush.msra.mxu0 %v600
    %951 = vmatpush.msra.mxu0 %v588
    %952 = vmatpush.msra.mxu0 %v576
    %953 = vmatpush.msra.mxu0 %v564
    %954 = vmatmul.f32.gmra.mxu0 %v174
    %v955 = vpop.f32.mrf.mxu0
    %v956 = vadd.f32 %v933, %v955
    %957 = vmatmul.f32.gmra.mxu0 %v177
    %v958 = vpop.f32.mrf.mxu0
    %v959 = vadd.f32 %v936, %v958
    %960 = vdwg.mxu0
    %961 = vmatpush.msra.mxu0 %v361
    %962 = vmatpush.msra.mxu0 %v349
    %963 = vmatpush.msra.mxu0 %v337
    %964 = vmatpush.msra.mxu0 %v325
    %965 = vmatpush.msra.mxu0 %v313
    %966 = vmatpush.msra.mxu0 %v301
    %967 = vmatpush.msra.mxu0 %v289
    %968 = vmatpush.msra.mxu0 %v277
    %969 = vmatpush.msra.mxu0 %v265
    %970 = vmatpush.msra.mxu0 %v253
    %971 = vmatpush.msra.mxu0 %v241
    %972 = vmatpush.msra.mxu0 %v229
    %973 = vmatpush.msra.mxu0 %v217
    %974 = vmatpush.msra.mxu0 %v205
    %975 = vmatpush.msra.mxu0 %v193
    %976 = vmatpush.msra.mxu0 %v181
    %977 = vmatmul.f32.gmra.mxu0 %v172
    %v978 = vpop.f32.mrf.mxu0
    %v979 = vadd.f32 0.0, %v978
    %980 = vmatmul.f32.gmra.mxu0 %v175
    %v981 = vpop.f32.mrf.mxu0
    %v982 = vadd.f32 0.0, %v981
    %983 = vdwg.mxu0
    %984 = vmatpush.msra.mxu0 %v553
    %985 = vmatpush.msra.mxu0 %v541
    %986 = vmatpush.msra.mxu0 %v529
    %987 = vmatpush.msra.mxu0 %v517
    %988 = vmatpush.msra.mxu0 %v505
    %989 = vmatpush.msra.mxu0 %v493
    %990 = vmatpush.msra.mxu0 %v481
    %991 = vmatpush.msra.mxu0 %v469
    %992 = vmatpush.msra.mxu0 %v457
    %993 = vmatpush.msra.mxu0 %v445
    %994 = vmatpush.msra.mxu0 %v433
    %995 = vmatpush.msra.mxu0 %v421
    %996 = vmatpush.msra.mxu0 %v409
    %997 = vmatpush.msra.mxu0 %v397
    %998 = vmatpush.msra.mxu0 %v385
    %999 = vmatpush.msra.mxu0 %v373
    %1000 = vmatmul.f32.gmra.mxu0 %v173
    %v1001 = vpop.f32.mrf.mxu0
    %v1002 = vadd.f32 %v979, %v1001
    %1003 = vmatmul.f32.gmra.mxu0 %v176
    %v1004 = vpop.f32.mrf.mxu0
    %v1005 = vadd.f32 %v982, %v1004
    %1006 = vdwg.mxu0
    %1007 = vmatpush.msra.mxu0 %v745
    %1008 = vmatpush.msra.mxu0 %v733
    %1009 = vmatpush.msra.mxu0 %v721
    %1010 = vmatpush.msra.mxu0 %v709
    %1011 = vmatpush.msra.mxu0 %v697
    %1012 = vmatpush.msra.mxu0 %v685
    %1013 = vmatpush.msra.mxu0 %v673
    %1014 = vmatpush.msra.mxu0 %v661
    %1015 = vmatpush.msra.mxu0 %v649
    %1016 = vmatpush.msra.mxu0 %v637
    %1017 = vmatpush.msra.mxu0 %v625
    %1018 = vmatpush.msra.mxu0 %v613
    %1019 = vmatpush.msra.mxu0 %v601
    %1020 = vmatpush.msra.mxu0 %v589
    %1021 = vmatpush.msra.mxu0 %v577
    %1022 = vmatpush.msra.mxu0 %v565
    %1023 = vmatmul.f32.gmra.mxu0 %v174
    %v1024 = vpop.f32.mrf.mxu0
    %v1025 = vadd.f32 %v1002, %v1024
    %1026 = vmatmul.f32.gmra.mxu0 %v177
    %v1027 = vpop.f32.mrf.mxu0
    %v1028 = vadd.f32 %v1005, %v1027
    %1029 = vdwg.mxu0
    %1030 = vmatpush.msra.mxu0 %v362
    %1031 = vmatpush.msra.mxu0 %v350
    %1032 = vmatpush.msra.mxu0 %v338
    %1033 = vmatpush.msra.mxu0 %v326
    %1034 = vmatpush.msra.mxu0 %v314
    %1035 = vmatpush.msra.mxu0 %v302
    %1036 = vmatpush.msra.mxu0 %v290
    %1037 = vmatpush.msra.mxu0 %v278
    %1038 = vmatpush.msra.mxu0 %v266
    %1039 = vmatpush.msra.mxu0 %v254
    %1040 = vmatpush.msra.mxu0 %v242
    %1041 = vmatpush.msra.mxu0 %v230
    %1042 = vmatpush.msra.mxu0 %v218
    %1043 = vmatpush.msra.mxu0 %v206
    %1044 = vmatpush.msra.mxu0 %v194
    %1045 = vmatpush.msra.mxu0 %v182
    %1046 = vmatmul.f32.gmra.mxu0 %v172
    %v1047 = vpop.f32.mrf.mxu0
    %v1048 = vadd.f32 0.0, %v1047
    %1049 = vmatmul.f32.gmra.mxu0 %v175
    %v1050 = vpop.f32.mrf.mxu0
    %v1051 = vadd.f32 0.0, %v1050
    %1052 = vdwg.mxu0
    %1053 = vmatpush.msra.mxu0 %v554
    %1054 = vmatpush.msra.mxu0 %v542
    %1055 = vmatpush.msra.mxu0 %v530
    %1056 = vmatpush.msra.mxu0 %v518
    %1057 = vmatpush.msra.mxu0 %v506
    %1058 = vmatpush.msra.mxu0 %v494
    %1059 = vmatpush.msra.mxu0 %v482
    %1060 = vmatpush.msra.mxu0 %v470
    %1061 = vmatpush.msra.mxu0 %v458
    %1062 = vmatpush.msra.mxu0 %v446
    %1063 = vmatpush.msra.mxu0 %v434
    %1064 = vmatpush.msra.mxu0 %v422
    %1065 = vmatpush.msra.mxu0 %v410
    %1066 = vmatpush.msra.mxu0 %v398
    %1067 = vmatpush.msra.mxu0 %v386
    %1068 = vmatpush.msra.mxu0 %v374
    %1069 = vmatmul.f32.gmra.mxu0 %v173
    %v1070 = vpop.f32.mrf.mxu0
    %v1071 = vadd.f32 %v1048, %v1070
    %1072 = vmatmul.f32.gmra.mxu0 %v176
    %v1073 = vpop.f32.mrf.mxu0
    %v1074 = vadd.f32 %v1051, %v1073
    %1075 = vdwg.mxu0
    %1076 = vmatpush.msra.mxu0 %v746
    %1077 = vmatpush.msra.mxu0 %v734
    %1078 = vmatpush.msra.mxu0 %v722
    %1079 = vmatpush.msra.mxu0 %v710
    %1080 = vmatpush.msra.mxu0 %v698
    %1081 = vmatpush.msra.mxu0 %v686
    %1082 = vmatpush.msra.mxu0 %v674
    %1083 = vmatpush.msra.mxu0 %v662
    %1084 = vmatpush.msra.mxu0 %v650
    %1085 = vmatpush.msra.mxu0 %v638
    %1086 = vmatpush.msra.mxu0 %v626
    %1087 = vmatpush.msra.mxu0 %v614
    %1088 = vmatpush.msra.mxu0 %v602
    %1089 = vmatpush.msra.mxu0 %v590
    %1090 = vmatpush.msra.mxu0 %v578
    %1091 = vmatpush.msra.mxu0 %v566
    %1092 = vmatmul.f32.gmra.mxu0 %v174
    %v1093 = vpop.f32.mrf.mxu0
    %v1094 = vadd.f32 %v1071, %v1093
    %1095 = vmatmul.f32.gmra.mxu0 %v177
    %v1096 = vpop.f32.mrf.mxu0
    %v1097 = vadd.f32 %v1074, %v1096
    %1098 = vdwg.mxu0
    %1099 = vmatpush.msra.mxu0 %v363
    %1100 = vmatpush.msra.mxu0 %v351
    %1101 = vmatpush.msra.mxu0 %v339
    %1102 = vmatpush.msra.mxu0 %v327
    %1103 = vmatpush.msra.mxu0 %v315
    %1104 = vmatpush.msra.mxu0 %v303
    %1105 = vmatpush.msra.mxu0 %v291
    %1106 = vmatpush.msra.mxu0 %v279
    %1107 = vmatpush.msra.mxu0 %v267
    %1108 = vmatpush.msra.mxu0 %v255
    %1109 = vmatpush.msra.mxu0 %v243
    %1110 = vmatpush.msra.mxu0 %v231
    %1111 = vmatpush.msra.mxu0 %v219
    %1112 = vmatpush.msra.mxu0 %v207
    %1113 = vmatpush.msra.mxu0 %v195
    %1114 = vmatpush.msra.mxu0 %v183
    %1115 = vmatmul.f32.gmra.mxu0 %v172
    %v1116 = vpop.f32.mrf.mxu0
    %v1117 = vadd.f32 0.0, %v1116
    %1118 = vmatmul.f32.gmra.mxu0 %v175
    %v1119 = vpop.f32.mrf.mxu0
    %v1120 = vadd.f32 0.0, %v1119
    %1121 = vdwg.mxu0
    %1122 = vmatpush.msra.mxu0 %v555
    %1123 = vmatpush.msra.mxu0 %v543
    %1124 = vmatpush.msra.mxu0 %v531
    %1125 = vmatpush.msra.mxu0 %v519
    %1126 = vmatpush.msra.mxu0 %v507
    %1127 = vmatpush.msra.mxu0 %v495
    %1128 = vmatpush.msra.mxu0 %v483
    %1129 = vmatpush.msra.mxu0 %v471
    %1130 = vmatpush.msra.mxu0 %v459
    %1131 = vmatpush.msra.mxu0 %v447
    %1132 = vmatpush.msra.mxu0 %v435
    %1133 = vmatpush.msra.mxu0 %v423
    %1134 = vmatpush.msra.mxu0 %v411
    %1135 = vmatpush.msra.mxu0 %v399
    %1136 = vmatpush.msra.mxu0 %v387
    %1137 = vmatpush.msra.mxu0 %v375
    %1138 = vmatmul.f32.gmra.mxu0 %v173
    %v1139 = vpop.f32.mrf.mxu0
    %v1140 = vadd.f32 %v1117, %v1139
    %1141 = vmatmul.f32.gmra.mxu0 %v176
    %v1142 = vpop.f32.mrf.mxu0
    %v1143 = vadd.f32 %v1120, %v1142
    %1144 = vdwg.mxu0
    %1145 = vmatpush.msra.mxu0 %v747
    %1146 = vmatpush.msra.mxu0 %v735
    %1147 = vmatpush.msra.mxu0 %v723
    %1148 = vmatpush.msra.mxu0 %v711
    %1149 = vmatpush.msra.mxu0 %v699
    %1150 = vmatpush.msra.mxu0 %v687
    %1151 = vmatpush.msra.mxu0 %v675
    %1152 = vmatpush.msra.mxu0 %v663
    %1153 = vmatpush.msra.mxu0 %v651
    %1154 = vmatpush.msra.mxu0 %v639
    %1155 = vmatpush.msra.mxu0 %v627
    %1156 = vmatpush.msra.mxu0 %v615
    %1157 = vmatpush.msra.mxu0 %v603
    %1158 = vmatpush.msra.mxu0 %v591
    %1159 = vmatpush.msra.mxu0 %v579
    %1160 = vmatpush.msra.mxu0 %v567
    %1161 = vmatmul.f32.gmra.mxu0 %v174
    %v1162 = vpop.f32.mrf.mxu0
    %v1163 = vadd.f32 %v1140, %v1162
    %1164 = vmatmul.f32.gmra.mxu0 %v177
    %v1165 = vpop.f32.mrf.mxu0
    %v1166 = vadd.f32 %v1143, %v1165
    %1167 = vdwg.mxu0
    %1168 = vmatpush.msra.mxu0 %v364
    %1169 = vmatpush.msra.mxu0 %v352
    %1170 = vmatpush.msra.mxu0 %v340
    %1171 = vmatpush.msra.mxu0 %v328
    %1172 = vmatpush.msra.mxu0 %v316
    %1173 = vmatpush.msra.mxu0 %v304
    %1174 = vmatpush.msra.mxu0 %v292
    %1175 = vmatpush.msra.mxu0 %v280
    %1176 = vmatpush.msra.mxu0 %v268
    %1177 = vmatpush.msra.mxu0 %v256
    %1178 = vmatpush.msra.mxu0 %v244
    %1179 = vmatpush.msra.mxu0 %v232
    %1180 = vmatpush.msra.mxu0 %v220
    %1181 = vmatpush.msra.mxu0 %v208
    %1182 = vmatpush.msra.mxu0 %v196
    %1183 = vmatpush.msra.mxu0 %v184
    %1184 = vmatmul.f32.gmra.mxu0 %v172
    %v1185 = vpop.f32.mrf.mxu0
    %v1186 = vadd.f32 0.0, %v1185
    %1187 = vmatmul.f32.gmra.mxu0 %v175
    %v1188 = vpop.f32.mrf.mxu0
    %v1189 = vadd.f32 0.0, %v1188
    %1190 = vdwg.mxu0
    %1191 = vmatpush.msra.mxu0 %v556
    %1192 = vmatpush.msra.mxu0 %v544
    %1193 = vmatpush.msra.mxu0 %v532
    %1194 = vmatpush.msra.mxu0 %v520
    %1195 = vmatpush.msra.mxu0 %v508
    %1196 = vmatpush.msra.mxu0 %v496
    %1197 = vmatpush.msra.mxu0 %v484
    %1198 = vmatpush.msra.mxu0 %v472
    %1199 = vmatpush.msra.mxu0 %v460
    %1200 = vmatpush.msra.mxu0 %v448
    %1201 = vmatpush.msra.mxu0 %v436
    %1202 = vmatpush.msra.mxu0 %v424
    %1203 = vmatpush.msra.mxu0 %v412
    %1204 = vmatpush.msra.mxu0 %v400
    %1205 = vmatpush.msra.mxu0 %v388
    %1206 = vmatpush.msra.mxu0 %v376
    %1207 = vmatmul.f32.gmra.mxu0 %v173
    %v1208 = vpop.f32.mrf.mxu0
    %v1209 = vadd.f32 %v1186, %v1208
    %1210 = vmatmul.f32.gmra.mxu0 %v176
    %v1211 = vpop.f32.mrf.mxu0
    %v1212 = vadd.f32 %v1189, %v1211
    %1213 = vdwg.mxu0
    %1214 = vmatpush.msra.mxu0 %v748
    %1215 = vmatpush.msra.mxu0 %v736
    %1216 = vmatpush.msra.mxu0 %v724
    %1217 = vmatpush.msra.mxu0 %v712
    %1218 = vmatpush.msra.mxu0 %v700
    %1219 = vmatpush.msra.mxu0 %v688
    %1220 = vmatpush.msra.mxu0 %v676
    %1221 = vmatpush.msra.mxu0 %v664
    %1222 = vmatpush.msra.mxu0 %v652
    %1223 = vmatpush.msra.mxu0 %v640
    %1224 = vmatpush.msra.mxu0 %v628
    %1225 = vmatpush.msra.mxu0 %v616
    %1226 = vmatpush.msra.mxu0 %v604
    %1227 = vmatpush.msra.mxu0 %v592
    %1228 = vmatpush.msra.mxu0 %v580
    %1229 = vmatpush.msra.mxu0 %v568
    %1230 = vmatmul.f32.gmra.mxu0 %v174
    %v1231 = vpop.f32.mrf.mxu0
    %v1232 = vadd.f32 %v1209, %v1231
    %1233 = vmatmul.f32.gmra.mxu0 %v177
    %v1234 = vpop.f32.mrf.mxu0
    %v1235 = vadd.f32 %v1212, %v1234
    %1236 = vdwg.mxu0
    %1237 = vmatpush.msra.mxu0 %v365
    %1238 = vmatpush.msra.mxu0 %v353
    %1239 = vmatpush.msra.mxu0 %v341
    %1240 = vmatpush.msra.mxu0 %v329
    %1241 = vmatpush.msra.mxu0 %v317
    %1242 = vmatpush.msra.mxu0 %v305
    %1243 = vmatpush.msra.mxu0 %v293
    %1244 = vmatpush.msra.mxu0 %v281
    %1245 = vmatpush.msra.mxu0 %v269
    %1246 = vmatpush.msra.mxu0 %v257
    %1247 = vmatpush.msra.mxu0 %v245
    %1248 = vmatpush.msra.mxu0 %v233
    %1249 = vmatpush.msra.mxu0 %v221
    %1250 = vmatpush.msra.mxu0 %v209
    %1251 = vmatpush.msra.mxu0 %v197
    %1252 = vmatpush.msra.mxu0 %v185
    %1253 = vmatmul.f32.gmra.mxu0 %v172
    %v1254 = vpop.f32.mrf.mxu0
    %v1255 = vadd.f32 0.0, %v1254
    %1256 = vmatmul.f32.gmra.mxu0 %v175
    %v1257 = vpop.f32.mrf.mxu0
    %v1258 = vadd.f32 0.0, %v1257
    %1259 = vdwg.mxu0
    %1260 = vmatpush.msra.mxu0 %v557
    %1261 = vmatpush.msra.mxu0 %v545
    %1262 = vmatpush.msra.mxu0 %v533
    %1263 = vmatpush.msra.mxu0 %v521
    %1264 = vmatpush.msra.mxu0 %v509
    %1265 = vmatpush.msra.mxu0 %v497
    %1266 = vmatpush.msra.mxu0 %v485
    %1267 = vmatpush.msra.mxu0 %v473
    %1268 = vmatpush.msra.mxu0 %v461
    %1269 = vmatpush.msra.mxu0 %v449
    %1270 = vmatpush.msra.mxu0 %v437
    %1271 = vmatpush.msra.mxu0 %v425
    %1272 = vmatpush.msra.mxu0 %v413
    %1273 = vmatpush.msra.mxu0 %v401
    %1274 = vmatpush.msra.mxu0 %v389
    %1275 = vmatpush.msra.mxu0 %v377
    %1276 = vmatmul.f32.gmra.mxu0 %v173
    %v1277 = vpop.f32.mrf.mxu0
    %v1278 = vadd.f32 %v1255, %v1277
    %1279 = vmatmul.f32.gmra.mxu0 %v176
    %v1280 = vpop.f32.mrf.mxu0
    %v1281 = vadd.f32 %v1258, %v1280
    %1282 = vdwg.mxu0
    %1283 = vmatpush.msra.mxu0 %v749
    %1284 = vmatpush.msra.mxu0 %v737
    %1285 = vmatpush.msra.mxu0 %v725
    %1286 = vmatpush.msra.mxu0 %v713
    %1287 = vmatpush.msra.mxu0 %v701
    %1288 = vmatpush.msra.mxu0 %v689
    %1289 = vmatpush.msra.mxu0 %v677
    %1290 = vmatpush.msra.mxu0 %v665
    %1291 = vmatpush.msra.mxu0 %v653
    %1292 = vmatpush.msra.mxu0 %v641
    %1293 = vmatpush.msra.mxu0 %v629
    %1294 = vmatpush.msra.mxu0 %v617
    %1295 = vmatpush.msra.mxu0 %v605
    %1296 = vmatpush.msra.mxu0 %v593
    %1297 = vmatpush.msra.mxu0 %v581
    %1298 = vmatpush.msra.mxu0 %v569
    %1299 = vmatmul.f32.gmra.mxu0 %v174
    %v1300 = vpop.f32.mrf.mxu0
    %v1301 = vadd.f32 %v1278, %v1300
    %1302 = vmatmul.f32.gmra.mxu0 %v177
    %v1303 = vpop.f32.mrf.mxu0
    %v1304 = vadd.f32 %v1281, %v1303
    %1305 = vdwg.mxu0
    %1306 = vmatpush.msra.mxu0 %v366
    %1307 = vmatpush.msra.mxu0 %v354
    %1308 = vmatpush.msra.mxu0 %v342
    %1309 = vmatpush.msra.mxu0 %v330
    %1310 = vmatpush.msra.mxu0 %v318
    %1311 = vmatpush.msra.mxu0 %v306
    %1312 = vmatpush.msra.mxu0 %v294
    %1313 = vmatpush.msra.mxu0 %v282
    %1314 = vmatpush.msra.mxu0 %v270
    %1315 = vmatpush.msra.mxu0 %v258
    %1316 = vmatpush.msra.mxu0 %v246
    %1317 = vmatpush.msra.mxu0 %v234
    %1318 = vmatpush.msra.mxu0 %v222
    %1319 = vmatpush.msra.mxu0 %v210
    %1320 = vmatpush.msra.mxu0 %v198
    %1321 = vmatpush.msra.mxu0 %v186
    %1322 = vmatmul.f32.gmra.mxu0 %v172
    %v1323 = vpop.f32.mrf.mxu0
    %v1324 = vadd.f32 0.0, %v1323
    %1325 = vmatmul.f32.gmra.mxu0 %v175
    %v1326 = vpop.f32.mrf.mxu0
    %v1327 = vadd.f32 0.0, %v1326
    %1328 = vdwg.mxu0
    %1329 = vmatpush.msra.mxu0 %v558
    %1330 = vmatpush.msra.mxu0 %v546
    %1331 = vmatpush.msra.mxu0 %v534
    %1332 = vmatpush.msra.mxu0 %v522
    %1333 = vmatpush.msra.mxu0 %v510
    %1334 = vmatpush.msra.mxu0 %v498
    %1335 = vmatpush.msra.mxu0 %v486
    %1336 = vmatpush.msra.mxu0 %v474
    %1337 = vmatpush.msra.mxu0 %v462
    %1338 = vmatpush.msra.mxu0 %v450
    %1339 = vmatpush.msra.mxu0 %v438
    %1340 = vmatpush.msra.mxu0 %v426
    %1341 = vmatpush.msra.mxu0 %v414
    %1342 = vmatpush.msra.mxu0 %v402
    %1343 = vmatpush.msra.mxu0 %v390
    %1344 = vmatpush.msra.mxu0 %v378
    %1345 = vmatmul.f32.gmra.mxu0 %v173
    %v1346 = vpop.f32.mrf.mxu0
    %v1347 = vadd.f32 %v1324, %v1346
    %1348 = vmatmul.f32.gmra.mxu0 %v176
    %v1349 = vpop.f32.mrf.mxu0
    %v1350 = vadd.f32 %v1327, %v1349
    %1351 = vdwg.mxu0
    %1352 = vmatpush.msra.mxu0 %v750
    %1353 = vmatpush.msra.mxu0 %v738
    %1354 = vmatpush.msra.mxu0 %v726
    %1355 = vmatpush.msra.mxu0 %v714
    %1356 = vmatpush.msra.mxu0 %v702
    %1357 = vmatpush.msra.mxu0 %v690
    %1358 = vmatpush.msra.mxu0 %v678
    %1359 = vmatpush.msra.mxu0 %v666
    %1360 = vmatpush.msra.mxu0 %v654
    %1361 = vmatpush.msra.mxu0 %v642
    %1362 = vmatpush.msra.mxu0 %v630
    %1363 = vmatpush.msra.mxu0 %v618
    %1364 = vmatpush.msra.mxu0 %v606
    %1365 = vmatpush.msra.mxu0 %v594
    %1366 = vmatpush.msra.mxu0 %v582
    %1367 = vmatpush.msra.mxu0 %v570
    %1368 = vmatmul.f32.gmra.mxu0 %v174
    %v1369 = vpop.f32.mrf.mxu0
    %v1370 = vadd.f32 %v1347, %v1369
    %1371 = vmatmul.f32.gmra.mxu0 %v177
    %v1372 = vpop.f32.mrf.mxu0
    %v1373 = vadd.f32 %v1350, %v1372
    %1374 = vdwg.mxu0
    %1375 = vmatpush.msra.mxu0 %v367
    %1376 = vmatpush.msra.mxu0 %v355
    %1377 = vmatpush.msra.mxu0 %v343
    %1378 = vmatpush.msra.mxu0 %v331
    %1379 = vmatpush.msra.mxu0 %v319
    %1380 = vmatpush.msra.mxu0 %v307
    %1381 = vmatpush.msra.mxu0 %v295
    %1382 = vmatpush.msra.mxu0 %v283
    %1383 = vmatpush.msra.mxu0 %v271
    %1384 = vmatpush.msra.mxu0 %v259
    %1385 = vmatpush.msra.mxu0 %v247
    %1386 = vmatpush.msra.mxu0 %v235
    %1387 = vmatpush.msra.mxu0 %v223
    %1388 = vmatpush.msra.mxu0 %v211
    %1389 = vmatpush.msra.mxu0 %v199
    %1390 = vmatpush.msra.mxu0 %v187
    %1391 = vmatmul.f32.gmra.mxu0 %v172
    %v1392 = vpop.f32.mrf.mxu0
    %v1393 = vadd.f32 0.0, %v1392
    %1394 = vmatmul.f32.gmra.mxu0 %v175
    %v1395 = vpop.f32.mrf.mxu0
    %v1396 = vadd.f32 0.0, %v1395
    %1397 = vdwg.mxu0
    %1398 = vmatpush.msra.mxu0 %v559
    %1399 = vmatpush.msra.mxu0 %v547
    %1400 = vmatpush.msra.mxu0 %v535
    %1401 = vmatpush.msra.mxu0 %v523
    %1402 = vmatpush.msra.mxu0 %v511
    %1403 = vmatpush.msra.mxu0 %v499
    %1404 = vmatpush.msra.mxu0 %v487
    %1405 = vmatpush.msra.mxu0 %v475
    %1406 = vmatpush.msra.mxu0 %v463
    %1407 = vmatpush.msra.mxu0 %v451
    %1408 = vmatpush.msra.mxu0 %v439
    %1409 = vmatpush.msra.mxu0 %v427
    %1410 = vmatpush.msra.mxu0 %v415
    %1411 = vmatpush.msra.mxu0 %v403
    %1412 = vmatpush.msra.mxu0 %v391
    %1413 = vmatpush.msra.mxu0 %v379
    %1414 = vmatmul.f32.gmra.mxu0 %v173
    %v1415 = vpop.f32.mrf.mxu0
    %v1416 = vadd.f32 %v1393, %v1415
    %1417 = vmatmul.f32.gmra.mxu0 %v176
    %v1418 = vpop.f32.mrf.mxu0
    %v1419 = vadd.f32 %v1396, %v1418
    %1420 = vdwg.mxu0
    %1421 = vmatpush.msra.mxu0 %v751
    %1422 = vmatpush.msra.mxu0 %v739
    %1423 = vmatpush.msra.mxu0 %v727
    %1424 = vmatpush.msra.mxu0 %v715
    %1425 = vmatpush.msra.mxu0 %v703
    %1426 = vmatpush.msra.mxu0 %v691
    %1427 = vmatpush.msra.mxu0 %v679
    %1428 = vmatpush.msra.mxu0 %v667
    %1429 = vmatpush.msra.mxu0 %v655
    %1430 = vmatpush.msra.mxu0 %v643
    %1431 = vmatpush.msra.mxu0 %v631
    %1432 = vmatpush.msra.mxu0 %v619
    %1433 = vmatpush.msra.mxu0 %v607
    %1434 = vmatpush.msra.mxu0 %v595
    %1435 = vmatpush.msra.mxu0 %v583
    %1436 = vmatpush.msra.mxu0 %v571
    %1437 = vmatmul.f32.gmra.mxu0 %v174
    %v1438 = vpop.f32.mrf.mxu0
    %v1439 = vadd.f32 %v1416, %v1438
    %1440 = vmatmul.f32.gmra.mxu0 %v177
    %v1441 = vpop.f32.mrf.mxu0
    %v1442 = vadd.f32 %v1419, %v1441
    %1443 = vdwg.mxu0
    %1444 = vmatpush.msra.mxu0 %v368
    %1445 = vmatpush.msra.mxu0 %v356
    %1446 = vmatpush.msra.mxu0 %v344
    %1447 = vmatpush.msra.mxu0 %v332
    %1448 = vmatpush.msra.mxu0 %v320
    %1449 = vmatpush.msra.mxu0 %v308
    %1450 = vmatpush.msra.mxu0 %v296
    %1451 = vmatpush.msra.mxu0 %v284
    %1452 = vmatpush.msra.mxu0 %v272
    %1453 = vmatpush.msra.mxu0 %v260
    %1454 = vmatpush.msra.mxu0 %v248
    %1455 = vmatpush.msra.mxu0 %v236
    %1456 = vmatpush.msra.mxu0 %v224
    %1457 = vmatpush.msra.mxu0 %v212
    %1458 = vmatpush.msra.mxu0 %v200
    %1459 = vmatpush.msra.mxu0 %v188
    %1460 = vmatmul.f32.gmra.mxu0 %v172
    %v1461 = vpop.f32.mrf.mxu0
    %v1462 = vadd.f32 0.0, %v1461
    %1463 = vmatmul.f32.gmra.mxu0 %v175
    %v1464 = vpop.f32.mrf.mxu0
    %v1465 = vadd.f32 0.0, %v1464
    %1466 = vdwg.mxu0
    %1467 = vmatpush.msra.mxu0 %v560
    %1468 = vmatpush.msra.mxu0 %v548
    %1469 = vmatpush.msra.mxu0 %v536
    %1470 = vmatpush.msra.mxu0 %v524
    %1471 = vmatpush.msra.mxu0 %v512
    %1472 = vmatpush.msra.mxu0 %v500
    %1473 = vmatpush.msra.mxu0 %v488
    %1474 = vmatpush.msra.mxu0 %v476
    %1475 = vmatpush.msra.mxu0 %v464
    %1476 = vmatpush.msra.mxu0 %v452
    %1477 = vmatpush.msra.mxu0 %v440
    %1478 = vmatpush.msra.mxu0 %v428
    %1479 = vmatpush.msra.mxu0 %v416
    %1480 = vmatpush.msra.mxu0 %v404
    %1481 = vmatpush.msra.mxu0 %v392
    %1482 = vmatpush.msra.mxu0 %v380
    %1483 = vmatmul.f32.gmra.mxu0 %v173
    %v1484 = vpop.f32.mrf.mxu0
    %v1485 = vadd.f32 %v1462, %v1484
    %1486 = vmatmul.f32.gmra.mxu0 %v176
    %v1487 = vpop.f32.mrf.mxu0
    %v1488 = vadd.f32 %v1465, %v1487
    %1489 = vdwg.mxu0
    %1490 = vmatpush.msra.mxu0 %v752
    %1491 = vmatpush.msra.mxu0 %v740
    %1492 = vmatpush.msra.mxu0 %v728
    %1493 = vmatpush.msra.mxu0 %v716
    %1494 = vmatpush.msra.mxu0 %v704
    %1495 = vmatpush.msra.mxu0 %v692
    %1496 = vmatpush.msra.mxu0 %v680
    %1497 = vmatpush.msra.mxu0 %v668
    %1498 = vmatpush.msra.mxu0 %v656
    %1499 = vmatpush.msra.mxu0 %v644
    %1500 = vmatpush.msra.mxu0 %v632
    %1501 = vmatpush.msra.mxu0 %v620
    %1502 = vmatpush.msra.mxu0 %v608
    %1503 = vmatpush.msra.mxu0 %v596
    %1504 = vmatpush.msra.mxu0 %v584
    %1505 = vmatpush.msra.mxu0 %v572
    %1506 = vmatmul.f32.gmra.mxu0 %v174
    %v1507 = vpop.f32.mrf.mxu0
    %v1508 = vadd.f32 %v1485, %v1507
    %1509 = vmatmul.f32.gmra.mxu0 %v177
    %v1510 = vpop.f32.mrf.mxu0
    %v1511 = vadd.f32 %v1488, %v1510
    %1512 = vdwg.mxu0
    %1513 = vmatpush.msra.mxu0 %v369
    %1514 = vmatpush.msra.mxu0 %v357
    %1515 = vmatpush.msra.mxu0 %v345
    %1516 = vmatpush.msra.mxu0 %v333
    %1517 = vmatpush.msra.mxu0 %v321
    %1518 = vmatpush.msra.mxu0 %v309
    %1519 = vmatpush.msra.mxu0 %v297
    %1520 = vmatpush.msra.mxu0 %v285
    %1521 = vmatpush.msra.mxu0 %v273
    %1522 = vmatpush.msra.mxu0 %v261
    %1523 = vmatpush.msra.mxu0 %v249
    %1524 = vmatpush.msra.mxu0 %v237
    %1525 = vmatpush.msra.mxu0 %v225
    %1526 = vmatpush.msra.mxu0 %v213
    %1527 = vmatpush.msra.mxu0 %v201
    %1528 = vmatpush.msra.mxu0 %v189
    %1529 = vmatmul.f32.gmra.mxu0 %v172
    %v1530 = vpop.f32.mrf.mxu0
    %v1531 = vadd.f32 0.0, %v1530
    %1532 = vmatmul.f32.gmra.mxu0 %v175
    %v1533 = vpop.f32.mrf.mxu0
    %v1534 = vadd.f32 0.0, %v1533
    %1535 = vdwg.mxu0
    %1536 = vmatpush.msra.mxu0 %v561
    %1537 = vmatpush.msra.mxu0 %v549
    %1538 = vmatpush.msra.mxu0 %v537
    %1539 = vmatpush.msra.mxu0 %v525
    %1540 = vmatpush.msra.mxu0 %v513
    %1541 = vmatpush.msra.mxu0 %v501
    %1542 = vmatpush.msra.mxu0 %v489
    %1543 = vmatpush.msra.mxu0 %v477
    %1544 = vmatpush.msra.mxu0 %v465
    %1545 = vmatpush.msra.mxu0 %v453
    %1546 = vmatpush.msra.mxu0 %v441
    %1547 = vmatpush.msra.mxu0 %v429
    %1548 = vmatpush.msra.mxu0 %v417
    %1549 = vmatpush.msra.mxu0 %v405
    %1550 = vmatpush.msra.mxu0 %v393
    %1551 = vmatpush.msra.mxu0 %v381
    %1552 = vmatmul.f32.gmra.mxu0 %v173
    %v1553 = vpop.f32.mrf.mxu0
    %v1554 = vadd.f32 %v1531, %v1553
    %1555 = vmatmul.f32.gmra.mxu0 %v176
    %v1556 = vpop.f32.mrf.mxu0
    %v1557 = vadd.f32 %v1534, %v1556
    %1558 = vdwg.mxu0
    %1559 = vmatpush.msra.mxu0 %v753
    %1560 = vmatpush.msra.mxu0 %v741
    %1561 = vmatpush.msra.mxu0 %v729
    %1562 = vmatpush.msra.mxu0 %v717
    %1563 = vmatpush.msra.mxu0 %v705
    %1564 = vmatpush.msra.mxu0 %v693
    %1565 = vmatpush.msra.mxu0 %v681
    %1566 = vmatpush.msra.mxu0 %v669
    %1567 = vmatpush.msra.mxu0 %v657
    %1568 = vmatpush.msra.mxu0 %v645
    %1569 = vmatpush.msra.mxu0 %v633
    %1570 = vmatpush.msra.mxu0 %v621
    %1571 = vmatpush.msra.mxu0 %v609
    %1572 = vmatpush.msra.mxu0 %v597
    %1573 = vmatpush.msra.mxu0 %v585
    %1574 = vmatpush.msra.mxu0 %v573
    %1575 = vmatmul.f32.gmra.mxu0 %v174
    %v1576 = vpop.f32.mrf.mxu0
    %v1577 = vadd.f32 %v1554, %v1576
    %1578 = vmatmul.f32.gmra.mxu0 %v177
    %v1579 = vpop.f32.mrf.mxu0
    %v1580 = vadd.f32 %v1557, %v1579
    %1581 = vdwg.mxu0
    %1582 = vst [vmem:[#allocation10] sm:$0xff] %v818
    %1583 = vst [vmem:[#allocation10 + $0x8] sm:$0xff] %v887
    %1584 = vst [vmem:[#allocation10 + $0x10] sm:$0xff] %v956
    %1585 = vst [vmem:[#allocation10 + $0x18] sm:$0xff] %v1025
    %1586 = vst [vmem:[#allocation10 + $0x20] sm:$0xff] %v1094
    %1587 = vst [vmem:[#allocation10 + $0x28] sm:$0xff] %v1163
    %1588 = vst [vmem:[#allocation10 + $0x30] sm:$0xff] %v1232
    %1589 = vst [vmem:[#allocation10 + $0x38] sm:$0xff] %v1301
    %1590 = vst [vmem:[#allocation10 + $0x40] sm:$0xff] %v1370
    %1591 = vst [vmem:[#allocation10 + $0x48] sm:$0xff] %v1439
    %1592 = vst [vmem:[#allocation10 + $0x50] sm:$0xff] %v1508
    %1593 = vst [vmem:[#allocation10 + $0x58] sm:$0xff] %v1577
    %1594 = vst [vmem:[#allocation10 + $0x60] sm:$0xff] %v821
    %1595 = vst [vmem:[#allocation10 + $0x68] sm:$0xff] %v890
    %1596 = vst [vmem:[#allocation10 + $0x70] sm:$0xff] %v959
    %1597 = vst [vmem:[#allocation10 + $0x78] sm:$0xff] %v1028
    %1598 = vst [vmem:[#allocation10 + $0x80] sm:$0xff] %v1097
    %1599 = vst [vmem:[#allocation10 + $0x88] sm:$0xff] %v1166
    %1600 = vst [vmem:[#allocation10 + $0x90] sm:$0xff] %v1235
    %1601 = vst [vmem:[#allocation10 + $0x98] sm:$0xff] %v1304
    %1602 = vst [vmem:[#allocation10 + $0xa0] sm:$0xff] %v1373
    %1603 = vst [vmem:[#allocation10 + $0xa8] sm:$0xff] %v1442
    %1604 = vst [vmem:[#allocation10 + $0xb0] sm:$0xff] %v1511
    %1605 = vst [vmem:[#allocation10 + $0xb8] sm:$0xff] %v1580
    // Predicated region
    $region34: #{tpu_custom_call.1} parent=1 // pred_check
      _
    $region35: #{tpu_custom_call.1} parent=1 // pred_check_branch
      %1607 = sbr.rel (0) target = $region37
    $region36: #{tpu_custom_call.1} parent=1 // pred_region
      %1609 = vsyncadd [#allocation4], 0
      %s1610 = sshll.u32 [#allocation10], 4
      %s1611 = int_to_ptr.vmem [resolvable:$true] %s1610
      %s1612 = sshll.u32 %s4, 4
      %s1613 = int_to_ptr.hbm [resolvable:$true] %s1612
      %1618 = dma.vmem_to_hbm [thread:$0]  %s1611, 3072, %s1613, [#allocation4], 1536, 1536, 96
    $region37: #{tpu_custom_call.1} parent=1 // pred_fallthru
      _
    // Predicated region
    $region38: #{tpu_custom_call.1} parent=1 // pred_check
      _
    $region39: #{tpu_custom_call.1} parent=1 // pred_check_branch
      %1620 = sbr.rel (0) target = $region41
    $region40: #{tpu_custom_call.1} parent=1 // pred_region
      %1622 = dma.done [#allocation4], 3072
    $region41: #{tpu_custom_call.1} parent=1 // pred_fallthru
      _
    %1623 = vsyncpa [#allocation3], 1
    %1624 = vsyncpa [#allocation6], 1
    %1625 = vsyncpa [#allocation9], 1
    %1626 = vsyncpa [#allocation4], 1

</llo_original>
